<compile_context>
chip_gen: v7x
topology: tpu7x:2x2x1
jax: 0.10.0
libtpu: 0.0.40
codegen_flags: <defaults>
</compile_context>

<pallas_src>
from functools import partial

import jax
import jax.numpy as jnp
from jax.experimental import pallas as pl
from jax.experimental.pallas import tpu as pltpu


LANES = 128  # pad all channel/output dims to this for lane-dense stores


# ----------------------------------------------------------------------------
# Pallas kernels
# ----------------------------------------------------------------------------
def _conv_pool_kernel(p_ref, w_ref, b_ref, o_ref):
    """p_ref: (4, TM, K) pool-ordered patches, w_ref: (K, 128), b_ref: (1, 128).
    Computes max over the 4 pool positions of (patches @ w), then bias + ReLU.
    (bias/ReLU commute with the max, so they are applied once after it.)"""
    w = w_ref[...]
    z = jnp.dot(p_ref[0], w, preferred_element_type=jnp.float32)
    for k in range(1, 4):
        z = jnp.maximum(z, jnp.dot(p_ref[k], w, preferred_element_type=jnp.float32))
    o_ref[...] = jnp.maximum(z + b_ref[...], 0.0)


def _head_kernel(x_ref, w3_ref, b3_ref, w4_ref, b4_ref, w5_ref, b5_ref, o_ref):
    """conv3 (as a 400->120 linear) + ReLU + fc1 + ReLU + fc2, all in VMEM."""
    h = jnp.dot(x_ref[...], w3_ref[...], preferred_element_type=jnp.float32)
    h = jnp.maximum(h + b3_ref[...], 0.0)
    h = jnp.dot(h, w4_ref[...], preferred_element_type=jnp.float32)
    h = jnp.maximum(h + b4_ref[...], 0.0)
    o_ref[...] = jnp.dot(h, w5_ref[...], preferred_element_type=jnp.float32) + b5_ref[...]


# ----------------------------------------------------------------------------
# Pallas wrappers
# ----------------------------------------------------------------------------
def conv_pool_stage(p4, w_p, b_p, *, tm):
    """p4: (4, Mp, K) pool-ordered patches; w_p: (K, 128); b_p: (1, 128).
    Returns pooled, ReLU'd activations (Mp, 128), lane-dense."""
    _, mp, k = p4.shape
    cp = w_p.shape[1]
    mp_pad = ((mp + tm - 1) // tm) * tm
    if mp_pad != mp:
        p4 = jnp.pad(p4, ((0, 0), (0, mp_pad - mp), (0, 0)))
    grid = (mp_pad // tm,)
    out = pl.pallas_call(
        _conv_pool_kernel,
        out_shape=jax.ShapeDtypeStruct((mp_pad, cp), jnp.float32),
        grid=grid,
        in_specs=[
            pl.BlockSpec((4, tm, k), lambda m: (0, m, 0)),
            pl.BlockSpec((k, cp), lambda m: (0, 0)),
            pl.BlockSpec((1, cp), lambda m: (0, 0)),
        ],
        out_specs=pl.BlockSpec((tm, cp), lambda m: (m, 0)),
        compiler_params=pltpu.CompilerParams(dimension_semantics=("parallel",)),
        cost_estimate=pl.CostEstimate(
            flops=2 * 4 * mp_pad * k * cp,
            transcendentals=0,
            bytes_accessed=4 * (4 * mp_pad * k + k * cp + cp + mp_pad * cp),
        ),
    )(p4, w_p, b_p)
    return out[:mp]


def head_pallas(x, w3, b3, w4, b4, w5, b5):
    """x: (N, 400). One kernel for conv3 + fc1 + fc2 (tiny M => no grid)."""
    n, k = x.shape
    c = w3.shape[1]
    return pl.pallas_call(
        _head_kernel,
        out_shape=jax.ShapeDtypeStruct((n, c), jnp.float32),
        in_specs=[
            pl.BlockSpec((n, k), lambda: (0, 0)),
            pl.BlockSpec((k, c), lambda: (0, 0)),
            pl.BlockSpec((1, c), lambda: (0, 0)),
            pl.BlockSpec((c, c), lambda: (0, 0)),
            pl.BlockSpec((1, c), lambda: (0, 0)),
            pl.BlockSpec((c, c), lambda: (0, 0)),
            pl.BlockSpec((1, c), lambda: (0, 0)),
        ],
        out_specs=pl.BlockSpec((n, c), lambda: (0, 0)),
        cost_estimate=pl.CostEstimate(
            flops=2 * n * (k * c + 2 * c * c),
            transcendentals=0,
            bytes_accessed=4 * (n * k + k * c + 2 * c * c + 3 * c + n * c),
        ),
    )(x, w3, b3, w4, b4, w5, b5)


# ----------------------------------------------------------------------------
# XLA glue: pool-ordered im2col patch construction (tiny, fuses into 1-2 ops)
# ----------------------------------------------------------------------------
def _conv_patches_pooled(a, kh, kw):
    """a: (N, H, W, C) NHWC -> (4, N*(OH//2)*(OW//2), kh*kw*C).
    Leading dim = 2x2 pool position; column order (i, j, c) matches the
    packed weights.  Valid conv, stride 1; OH/OW must be even (28, 10)."""
    n, h, w, c = a.shape
    oh, ow = h - kh + 1, w - kw + 1
    taps = []
    for i in range(kh):
        for j in range(kw):
            taps.append(a[:, i:i + oh, j:j + ow, :])          # (N, OH, OW, C)
    p = jnp.concatenate(taps, axis=-1)                        # (N, OH, OW, kh*kw*C)
    ph, pw = oh // 2, ow // 2
    blocks = [p[:, dy::2, dx::2, :] for dy in (0, 1) for dx in (0, 1)]
    p4 = jnp.stack(blocks, axis=0)                            # (4, N, PH, PW, K)
    return p4.reshape(4, n * ph * pw, kh * kw * c), ph, pw


# ----------------------------------------------------------------------------
# Parameters (PyTorch layout) and one-time packing to lane-dense layouts
# ----------------------------------------------------------------------------
def init_params(key):
    """Deterministic uniform(-1/sqrt(fan_in), 1/sqrt(fan_in)) init (PyTorch-style)."""
    def u(k, shape, fan_in):
        bound = 1.0 / jnp.sqrt(fan_in)
        return jax.random.uniform(k, shape, jnp.float32, -bound, bound)

    ks = jax.random.split(key, 10)
    return dict(
        conv1_w=u(ks[0], (6, 1, 5, 5), 1 * 5 * 5),
        conv1_b=u(ks[1], (6,), 1 * 5 * 5),
        conv2_w=u(ks[2], (16, 6, 5, 5), 6 * 5 * 5),
        conv2_b=u(ks[3], (16,), 6 * 5 * 5),
        conv3_w=u(ks[4], (120, 16, 5, 5), 16 * 5 * 5),
        conv3_b=u(ks[5], (120,), 16 * 5 * 5),
        fc1_w=u(ks[6], (84, 120), 120),
        fc1_b=u(ks[7], (84,), 120),
        fc2_w=u(ks[8], (10, 84), 84),
        fc2_b=u(ks[9], (10,), 84),
    )


def pack_params(params):
    """Pack PyTorch-layout params once: (K, Cout) matmul weights with Cout
    zero-padded to 128 lanes; biases as (1, 128).  Column order (i, j, ci)."""
    def pad_to(a, shape):
        return jnp.pad(a, [(0, s - d) for d, s in zip(a.shape, shape)])

    w1 = params["conv1_w"].transpose(2, 3, 1, 0).reshape(25, 6)     # (kh*kw*ci, co)
    w2 = params["conv2_w"].transpose(2, 3, 1, 0).reshape(150, 16)
    w3 = params["conv3_w"].transpose(2, 3, 1, 0).reshape(400, 120)
    return dict(
        w1=pad_to(w1, (25, LANES)),  b1=pad_to(params["conv1_b"].reshape(1, 6), (1, LANES)),
        w2=pad_to(w2, (150, LANES)), b2=pad_to(params["conv2_b"].reshape(1, 16), (1, LANES)),
        w3=pad_to(w3, (400, LANES)), b3=pad_to(params["conv3_b"].reshape(1, 120), (1, LANES)),
        w4=pad_to(params["fc1_w"].T, (LANES, LANES)),               # (120, 84) -> (128, 128)
        b4=pad_to(params["fc1_b"].reshape(1, 84), (1, LANES)),
        w5=pad_to(params["fc2_w"].T, (LANES, LANES)),               # (84, 10) -> (128, 128)
        b5=pad_to(params["fc2_b"].reshape(1, 10), (1, LANES)),
    )


# ----------------------------------------------------------------------------
# LeNet5 forward (3 pallas_calls)
# ----------------------------------------------------------------------------
def lenet5_forward(packed, x):
    # x: (N, 1, 32, 32) float32 (NCHW, C=1)
    n = x.shape[0]
    a0 = x.reshape(n, 32, 32, 1)                                     # NHWC (C=1)

    # stage 1: conv1(1->6, 5x5) + ReLU + maxpool2x2  -> (N*14*14, 128)
    p4, ph, pw = _conv_patches_pooled(a0, 5, 5)                      # (4, N*196, 25)
    a1 = conv_pool_stage(p4, packed["w1"], packed["b1"], tm=128)
    a1 = a1.reshape(n, ph, pw, LANES)[:, :, :, :6]                   # (N, 14, 14, 6)

    # stage 2: conv2(6->16, 5x5) + ReLU + maxpool2x2 -> (N*5*5, 128)
    p4, ph, pw = _conv_patches_pooled(a1, 5, 5)                      # (4, N*25, 150)
    a2 = conv_pool_stage(p4, packed["w2"], packed["b2"], tm=64)
    a2 = a2.reshape(n, ph, pw, LANES)[:, :, :, :16]                  # (N, 5, 5, 16)

    # head: conv3 (== linear over 400, (i, j, ci) order) + fc1 + fc2
    x3 = a2.reshape(n, 400)
    out = head_pallas(x3, packed["w3"], packed["b3"],
                      packed["w4"], packed["b4"],
                      packed["w5"], packed["b5"])                    # (N, 128)
    return out[:, :10]


# ----------------------------------------------------------------------------
# Pure-JAX reference (for numerical verification)
# ----------------------------------------------------------------------------
def _reference_forward(params, x):
    dn = ("NCHW", "OIHW", "NCHW")
    hi = jax.lax.Precision.HIGHEST

    def conv(a, w, b):
        y = jax.lax.conv_general_dilated(a, w, (1, 1), "VALID",
                                         dimension_numbers=dn, precision=hi)
        return y + b.reshape(1, -1, 1, 1)

    def pool(a):
        return jax.lax.reduce_window(a, -jnp.inf, jax.lax.max,
                                     (1, 1, 2, 2), (1, 1, 2, 2), "VALID")

    a = pool(jax.nn.relu(conv(x, params["conv1_w"], params["conv1_b"])))
    a = pool(jax.nn.relu(conv(a, params["conv2_w"], params["conv2_b"])))
    a = jax.nn.relu(conv(a, params["conv3_w"], params["conv3_b"])).reshape(-1, 120)
    a = jax.nn.relu(jnp.dot(a, params["fc1_w"].T, precision=hi) + params["fc1_b"])
    return jnp.dot(a, params["fc2_w"].T, precision=hi) + params["fc2_b"]


if __name__ == "__main__":
    key = jax.random.PRNGKey(0)
    k_param, k_x = jax.random.split(key)
    params = init_params(k_param)
    packed = pack_params(params)                      # one-time weight packing
    # LeNet5 requires 32x32 single-channel input (so conv3 output is 1x1).
    x = jax.random.normal(k_x, (2, 1, 32, 32), dtype=jnp.float32)

    out = jax.jit(lenet5_forward)(packed, x)
    out = jax.block_until_ready(out)
    assert out.shape == (2, 10) and out.dtype == jnp.float32

    ref = jax.jit(_reference_forward)(params, x)
    ref = jax.block_until_ready(ref)
    assert float(jnp.max(jnp.abs(out - ref))) < 1e-2

    print("KERNEL_OK")
</pallas_src>

<mosaic_0001>
module attributes {stable_mosaic.version = 11 : i64} {
  func.func @_conv_pool_kernel(%arg0: i32, %arg1: memref<4x128x25xf32, #tpu.memory_space<vmem>>, %arg2: memref<25x128xf32, #tpu.memory_space<vmem>>, %arg3: memref<1x128xf32, #tpu.memory_space<vmem>>, %arg4: memref<128x128xf32, #tpu.memory_space<vmem>>) attributes {dimension_semantics = [#tpu.dimension_semantics<parallel>], iteration_bounds = array<i64: 4>, scalar_prefetch = 0 : i64, scratch_operands = 0 : i64, tpu.core_type = #tpu.core_type<tc>, window_params = [{transform_indices = @transform_0, window_bounds = array<i64: 4, 128, 25>}, {pipeline_mode = #tpu.pipeline_mode<synchronous>, transform_indices = @transform_1, window_bounds = array<i64: 25, 128>}, {pipeline_mode = #tpu.pipeline_mode<synchronous>, transform_indices = @transform_2, window_bounds = array<i64: 1, 128>}, {transform_indices = @transform_3, window_bounds = array<i64: 128, 128>}]} {
    %c0 = arith.constant 0 : index
    %c0_0 = arith.constant 0 : index
    %0 = vector.load %arg2[%c0, %c0_0] : memref<25x128xf32, #tpu.memory_space<vmem>>, vector<25x128xf32>
    %c0_1 = arith.constant 0 : index
    %c0_2 = arith.constant 0 : index
    %c0_3 = arith.constant 0 : index
    %1 = vector.load %arg1[%c0_1, %c0_2, %c0_3] : memref<4x128x25xf32, #tpu.memory_space<vmem>>, vector<1x128x25xf32>
    %2 = vector.shape_cast %1 : vector<1x128x25xf32> to vector<128x25xf32>
    %cst = arith.constant dense<0.000000e+00> : vector<128x128xf32>
    %3 = tpu.matmul %2, %0, %cst {dimension_numbers = #tpu.dot_dimension_numbers<[1], [0], [0], [1], [0, 0, 1, 1], [], []>} : vector<128x25xf32>, vector<25x128xf32>, vector<128x128xf32> -> vector<128x128xf32>
    %c1 = arith.constant 1 : index
    %c0_4 = arith.constant 0 : index
    %c0_5 = arith.constant 0 : index
    %4 = vector.load %arg1[%c1, %c0_4, %c0_5] : memref<4x128x25xf32, #tpu.memory_space<vmem>>, vector<1x128x25xf32>
    %5 = vector.shape_cast %4 : vector<1x128x25xf32> to vector<128x25xf32>
    %cst_6 = arith.constant dense<0.000000e+00> : vector<128x128xf32>
    %6 = tpu.matmul %5, %0, %cst_6 {dimension_numbers = #tpu.dot_dimension_numbers<[1], [0], [0], [1], [0, 0, 1, 1], [], []>} : vector<128x25xf32>, vector<25x128xf32>, vector<128x128xf32> -> vector<128x128xf32>
    %7 = arith.maximumf %3, %6 : vector<128x128xf32>
    %c2 = arith.constant 2 : index
    %c0_7 = arith.constant 0 : index
    %c0_8 = arith.constant 0 : index
    %8 = vector.load %arg1[%c2, %c0_7, %c0_8] : memref<4x128x25xf32, #tpu.memory_space<vmem>>, vector<1x128x25xf32>
    %9 = vector.shape_cast %8 : vector<1x128x25xf32> to vector<128x25xf32>
    %cst_9 = arith.constant dense<0.000000e+00> : vector<128x128xf32>
    %10 = tpu.matmul %9, %0, %cst_9 {dimension_numbers = #tpu.dot_dimension_numbers<[1], [0], [0], [1], [0, 0, 1, 1], [], []>} : vector<128x25xf32>, vector<25x128xf32>, vector<128x128xf32> -> vector<128x128xf32>
    %11 = arith.maximumf %7, %10 : vector<128x128xf32>
    %c3 = arith.constant 3 : index
    %c0_10 = arith.constant 0 : index
    %c0_11 = arith.constant 0 : index
    %12 = vector.load %arg1[%c3, %c0_10, %c0_11] : memref<4x128x25xf32, #tpu.memory_space<vmem>>, vector<1x128x25xf32>
    %13 = vector.shape_cast %12 : vector<1x128x25xf32> to vector<128x25xf32>
    %cst_12 = arith.constant dense<0.000000e+00> : vector<128x128xf32>
    %14 = tpu.matmul %13, %0, %cst_12 {dimension_numbers = #tpu.dot_dimension_numbers<[1], [0], [0], [1], [0, 0, 1, 1], [], []>} : vector<128x25xf32>, vector<25x128xf32>, vector<128x128xf32> -> vector<128x128xf32>
    %15 = arith.maximumf %11, %14 : vector<128x128xf32>
    %c0_13 = arith.constant 0 : index
    %c0_14 = arith.constant 0 : index
    %16 = vector.load %arg3[%c0_13, %c0_14] : memref<1x128xf32, #tpu.memory_space<vmem>>, vector<1x128xf32>
    %17 = vector.broadcast %16 : vector<1x128xf32> to vector<128x128xf32>
    %18 = arith.addf %15, %17 : vector<128x128xf32>
    %cst_15 = arith.constant 0.000000e+00 : f32
    %19 = vector.broadcast %cst_15 : f32 to vector<128x128xf32>
    %20 = arith.maximumf %18, %19 : vector<128x128xf32>
    %c0_16 = arith.constant 0 : index
    %c0_17 = arith.constant 0 : index
    %21 = vector.load %arg4[%c0_16, %c0_17] : memref<128x128xf32, #tpu.memory_space<vmem>>, vector<128x128xf32>
    tpu.vector_store %arg4[%c0_16, %c0_17], %20 {strides = array<i32>} : memref<128x128xf32, #tpu.memory_space<vmem>>, vector<128x128xf32>,
    return
  }
  func.func @transform_0(%arg0: i32) -> (i32, i32, i32) {
    %c0_i32 = arith.constant 0 : i32
    %c0_i32_0 = arith.constant 0 : i32
    %c0_i32_1 = arith.constant 0 : i32
    return %c0_i32, %arg0, %c0_i32_0 : i32, i32, i32
  }
  func.func @transform_1(%arg0: i32) -> (i32, i32) {
    %c0_i32 = arith.constant 0 : i32
    %c0_i32_0 = arith.constant 0 : i32
    %c0_i32_1 = arith.constant 0 : i32
    return %c0_i32, %c0_i32_0 : i32, i32
  }
  func.func @transform_2(%arg0: i32) -> (i32, i32) {
    %c0_i32 = arith.constant 0 : i32
    %c0_i32_0 = arith.constant 0 : i32
    %c0_i32_1 = arith.constant 0 : i32
    return %c0_i32, %c0_i32_0 : i32, i32
  }
  func.func @transform_3(%arg0: i32) -> (i32, i32) {
    %c0_i32 = arith.constant 0 : i32
    %c0_i32_0 = arith.constant 0 : i32
    return %arg0, %c0_i32 : i32, i32
  }
}

module attributes {stable_mosaic.version = 11 : i64} {
  func.func @_conv_pool_kernel(%arg0: i32, %arg1: memref<4x64x150xf32, #tpu.memory_space<vmem>>, %arg2: memref<150x128xf32, #tpu.memory_space<vmem>>, %arg3: memref<1x128xf32, #tpu.memory_space<vmem>>, %arg4: memref<64x128xf32, #tpu.memory_space<vmem>>) attributes {dimension_semantics = [#tpu.dimension_semantics<parallel>], iteration_bounds = array<i64: 1>, scalar_prefetch = 0 : i64, scratch_operands = 0 : i64, tpu.core_type = #tpu.core_type<tc>, window_params = [{transform_indices = @transform_0, window_bounds = array<i64: 4, 64, 150>}, {pipeline_mode = #tpu.pipeline_mode<synchronous>, transform_indices = @transform_1, window_bounds = array<i64: 150, 128>}, {pipeline_mode = #tpu.pipeline_mode<synchronous>, transform_indices = @transform_2, window_bounds = array<i64: 1, 128>}, {transform_indices = @transform_3, window_bounds = array<i64: 64, 128>}]} {
    %c0 = arith.constant 0 : index
    %c0_0 = arith.constant 0 : index
    %0 = vector.load %arg2[%c0, %c0_0] : memref<150x128xf32, #tpu.memory_space<vmem>>, vector<150x128xf32>
    %c0_1 = arith.constant 0 : index
    %c0_2 = arith.constant 0 : index
    %c0_3 = arith.constant 0 : index
    %1 = vector.load %arg1[%c0_1, %c0_2, %c0_3] : memref<4x64x150xf32, #tpu.memory_space<vmem>>, vector<1x64x150xf32>
    %2 = vector.shape_cast %1 : vector<1x64x150xf32> to vector<64x150xf32>
    %cst = arith.constant dense<0.000000e+00> : vector<64x128xf32>
    %3 = tpu.matmul %2, %0, %cst {dimension_numbers = #tpu.dot_dimension_numbers<[1], [0], [0], [1], [0, 0, 1, 1], [], []>} : vector<64x150xf32>, vector<150x128xf32>, vector<64x128xf32> -> vector<64x128xf32>
    %c1 = arith.constant 1 : index
    %c0_4 = arith.constant 0 : index
    %c0_5 = arith.constant 0 : index
    %4 = vector.load %arg1[%c1, %c0_4, %c0_5] : memref<4x64x150xf32, #tpu.memory_space<vmem>>, vector<1x64x150xf32>
    %5 = vector.shape_cast %4 : vector<1x64x150xf32> to vector<64x150xf32>
    %cst_6 = arith.constant dense<0.000000e+00> : vector<64x128xf32>
    %6 = tpu.matmul %5, %0, %cst_6 {dimension_numbers = #tpu.dot_dimension_numbers<[1], [0], [0], [1], [0, 0, 1, 1], [], []>} : vector<64x150xf32>, vector<150x128xf32>, vector<64x128xf32> -> vector<64x128xf32>
    %7 = arith.maximumf %3, %6 : vector<64x128xf32>
    %c2 = arith.constant 2 : index
    %c0_7 = arith.constant 0 : index
    %c0_8 = arith.constant 0 : index
    %8 = vector.load %arg1[%c2, %c0_7, %c0_8] : memref<4x64x150xf32, #tpu.memory_space<vmem>>, vector<1x64x150xf32>
    %9 = vector.shape_cast %8 : vector<1x64x150xf32> to vector<64x150xf32>
    %cst_9 = arith.constant dense<0.000000e+00> : vector<64x128xf32>
    %10 = tpu.matmul %9, %0, %cst_9 {dimension_numbers = #tpu.dot_dimension_numbers<[1], [0], [0], [1], [0, 0, 1, 1], [], []>} : vector<64x150xf32>, vector<150x128xf32>, vector<64x128xf32> -> vector<64x128xf32>
    %11 = arith.maximumf %7, %10 : vector<64x128xf32>
    %c3 = arith.constant 3 : index
    %c0_10 = arith.constant 0 : index
    %c0_11 = arith.constant 0 : index
    %12 = vector.load %arg1[%c3, %c0_10, %c0_11] : memref<4x64x150xf32, #tpu.memory_space<vmem>>, vector<1x64x150xf32>
    %13 = vector.shape_cast %12 : vector<1x64x150xf32> to vector<64x150xf32>
    %cst_12 = arith.constant dense<0.000000e+00> : vector<64x128xf32>
    %14 = tpu.matmul %13, %0, %cst_12 {dimension_numbers = #tpu.dot_dimension_numbers<[1], [0], [0], [1], [0, 0, 1, 1], [], []>} : vector<64x150xf32>, vector<150x128xf32>, vector<64x128xf32> -> vector<64x128xf32>
    %15 = arith.maximumf %11, %14 : vector<64x128xf32>
    %c0_13 = arith.constant 0 : index
    %c0_14 = arith.constant 0 : index
    %16 = vector.load %arg3[%c0_13, %c0_14] : memref<1x128xf32, #tpu.memory_space<vmem>>, vector<1x128xf32>
    %17 = vector.broadcast %16 : vector<1x128xf32> to vector<64x128xf32>
    %18 = arith.addf %15, %17 : vector<64x128xf32>
    %cst_15 = arith.constant 0.000000e+00 : f32
    %19 = vector.broadcast %cst_15 : f32 to vector<64x128xf32>
    %20 = arith.maximumf %18, %19 : vector<64x128xf32>
    %c0_16 = arith.constant 0 : index
    %c0_17 = arith.constant 0 : index
    %21 = vector.load %arg4[%c0_16, %c0_17] : memref<64x128xf32, #tpu.memory_space<vmem>>, vector<64x128xf32>
    tpu.vector_store %arg4[%c0_16, %c0_17], %20 {strides = array<i32>} : memref<64x128xf32, #tpu.memory_space<vmem>>, vector<64x128xf32>,
    return
  }
  func.func @transform_0(%arg0: i32) -> (i32, i32, i32) {
    %c0_i32 = arith.constant 0 : i32
    %c0_i32_0 = arith.constant 0 : i32
    %c0_i32_1 = arith.constant 0 : i32
    return %c0_i32, %arg0, %c0_i32_0 : i32, i32, i32
  }
  func.func @transform_1(%arg0: i32) -> (i32, i32) {
    %c0_i32 = arith.constant 0 : i32
    %c0_i32_0 = arith.constant 0 : i32
    %c0_i32_1 = arith.constant 0 : i32
    return %c0_i32, %c0_i32_0 : i32, i32
  }
  func.func @transform_2(%arg0: i32) -> (i32, i32) {
    %c0_i32 = arith.constant 0 : i32
    %c0_i32_0 = arith.constant 0 : i32
    %c0_i32_1 = arith.constant 0 : i32
    return %c0_i32, %c0_i32_0 : i32, i32
  }
  func.func @transform_3(%arg0: i32) -> (i32, i32) {
    %c0_i32 = arith.constant 0 : i32
    %c0_i32_0 = arith.constant 0 : i32
    return %arg0, %c0_i32 : i32, i32
  }
}

module attributes {stable_mosaic.version = 11 : i64} {
  func.func @_head_kernel(%arg0: memref<2x400xf32, #tpu.memory_space<vmem>>, %arg1: memref<400x128xf32, #tpu.memory_space<vmem>>, %arg2: memref<1x128xf32, #tpu.memory_space<vmem>>, %arg3: memref<128x128xf32, #tpu.memory_space<vmem>>, %arg4: memref<1x128xf32, #tpu.memory_space<vmem>>, %arg5: memref<128x128xf32, #tpu.memory_space<vmem>>, %arg6: memref<1x128xf32, #tpu.memory_space<vmem>>, %arg7: memref<2x128xf32, #tpu.memory_space<vmem>>) attributes {dimension_semantics = [], scalar_prefetch = 0 : i64, scratch_operands = 0 : i64, tpu.core_type = #tpu.core_type<tc>} {
    %c0 = arith.constant 0 : index
    %c0_0 = arith.constant 0 : index
    %0 = vector.load %arg0[%c0, %c0_0] : memref<2x400xf32, #tpu.memory_space<vmem>>, vector<2x400xf32>
    %c0_1 = arith.constant 0 : index
    %c0_2 = arith.constant 0 : index
    %1 = vector.load %arg1[%c0_1, %c0_2] : memref<400x128xf32, #tpu.memory_space<vmem>>, vector<400x128xf32>
    %cst = arith.constant dense<0.000000e+00> : vector<2x128xf32>
    %2 = tpu.matmul %0, %1, %cst {dimension_numbers = #tpu.dot_dimension_numbers<[1], [0], [0], [1], [0, 0, 1, 1], [], []>} : vector<2x400xf32>, vector<400x128xf32>, vector<2x128xf32> -> vector<2x128xf32>
    %c0_3 = arith.constant 0 : index
    %c0_4 = arith.constant 0 : index
    %3 = vector.load %arg2[%c0_3, %c0_4] : memref<1x128xf32, #tpu.memory_space<vmem>>, vector<1x128xf32>
    %4 = vector.broadcast %3 : vector<1x128xf32> to vector<2x128xf32>
    %5 = arith.addf %2, %4 : vector<2x128xf32>
    %cst_5 = arith.constant 0.000000e+00 : f32
    %6 = vector.broadcast %cst_5 : f32 to vector<2x128xf32>
    %7 = arith.maximumf %5, %6 : vector<2x128xf32>
    %c0_6 = arith.constant 0 : index
    %c0_7 = arith.constant 0 : index
    %8 = vector.load %arg3[%c0_6, %c0_7] : memref<128x128xf32, #tpu.memory_space<vmem>>, vector<128x128xf32>
    %cst_8 = arith.constant dense<0.000000e+00> : vector<2x128xf32>
    %9 = tpu.matmul %7, %8, %cst_8 {dimension_numbers = #tpu.dot_dimension_numbers<[1], [0], [0], [1], [0, 0, 1, 1], [], []>} : vector<2x128xf32>, vector<128x128xf32>, vector<2x128xf32> -> vector<2x128xf32>
    %c0_9 = arith.constant 0 : index
    %c0_10 = arith.constant 0 : index
    %10 = vector.load %arg4[%c0_9, %c0_10] : memref<1x128xf32, #tpu.memory_space<vmem>>, vector<1x128xf32>
    %11 = vector.broadcast %10 : vector<1x128xf32> to vector<2x128xf32>
    %12 = arith.addf %9, %11 : vector<2x128xf32>
    %cst_11 = arith.constant 0.000000e+00 : f32
    %13 = vector.broadcast %cst_11 : f32 to vector<2x128xf32>
    %14 = arith.maximumf %12, %13 : vector<2x128xf32>
    %c0_12 = arith.constant 0 : index
    %c0_13 = arith.constant 0 : index
    %15 = vector.load %arg5[%c0_12, %c0_13] : memref<128x128xf32, #tpu.memory_space<vmem>>, vector<128x128xf32>
    %cst_14 = arith.constant dense<0.000000e+00> : vector<2x128xf32>
    %16 = tpu.matmul %14, %15, %cst_14 {dimension_numbers = #tpu.dot_dimension_numbers<[1], [0], [0], [1], [0, 0, 1, 1], [], []>} : vector<2x128xf32>, vector<128x128xf32>, vector<2x128xf32> -> vector<2x128xf32>
    %c0_15 = arith.constant 0 : index
    %c0_16 = arith.constant 0 : index
    %17 = vector.load %arg6[%c0_15, %c0_16] : memref<1x128xf32, #tpu.memory_space<vmem>>, vector<1x128xf32>
    %18 = vector.broadcast %17 : vector<1x128xf32> to vector<2x128xf32>
    %19 = arith.addf %16, %18 : vector<2x128xf32>
    %c0_17 = arith.constant 0 : index
    %c0_18 = arith.constant 0 : index
    %20 = vector.load %arg7[%c0_17, %c0_18] : memref<2x128xf32, #tpu.memory_space<vmem>>, vector<2x128xf32>
    tpu.vector_store %arg7[%c0_17, %c0_18], %19 {strides = array<i32>} : memref<2x128xf32, #tpu.memory_space<vmem>>, vector<2x128xf32>,
    return
  }
}

</mosaic_0001>

<llo_original>
// kernel: lenet5_forward.3
$region0: #{lenet5_forward.3}
  #allocation0 [shape = 'u32[]', space=smem, size = 0x4, offset = 0x4, fixed_abs, tag = 'smem constant byte address 0x4 - core index']
  #allocation1 [shape = 'u32[144,128]{1,0:T(1,128)}', space=vmem, size = 0x12000, scoped, tag = 'internal scratch']
  %s0 = inlined_call_operand.vmem [shape: f32[4,512,25], index: 0, kind: input, shape index: {}]
  %s1 = inlined_call_operand.vmem [shape: f32[25,128], index: 1, kind: input, shape index: {}]
  %s2 = inlined_call_operand.vmem [shape: f32[1,128], index: 2, kind: input, shape index: {}]
  %s3 = inlined_call_operand.vmem [shape: f32[512,128], index: 3, kind: output, shape index: {}]
  %s4 = sld [smem:[#allocation0]]
  $region83: #{lenet5_forward.3} parent=0
    _
  %s6 = ssub.s32 1, %s4
  %s7 = scalar_select 0, %s6, %s4
  $region1: #{lenet5_forward.3} parent=0
    #allocation2 [shape = 'u8[524288]{0}', space=vmem, size = 0x80000, scoped, tag = 'input window, operand 0']
    loop: start=0, step=1, limit=6
    $region2: #{lenet5_forward.3} parent=1 // loop_pre_header
      _
    $region3: #{lenet5_forward.3} parent=1 // loop_header
      %s9 = sphi 0, %s13
      %p10 = scmp.ge.s32.totalorder %s9, 6
      %s19 = sphi 0, %s21
      %s22 = sphi 0, %s19
      %s23 = sphi 0, %s22
      %s39 = sphi 0, %s23
      %s43 = sphi 0, %s43
      %s45 = sphi 0, %s43
      %s46 = sphi 0, %s45
      %s60 = sphi 0, %s46
      %s64 = sphi 0, %s64
      %s66 = sphi 0, %s64
      %s67 = sphi 0, %s66
      %s81 = sphi 0, %s67
      %s87 = sphi 0, %s89
      %s90 = sphi 0, %s87
      %s91 = sphi 0, %s90
      %s107 = sphi 0, %s91
    $region4: #{lenet5_forward.3} parent=1 // loop_header_branch
      %12 = sbr.rel (%p10) target = $region8
    $region5: #{lenet5_forward.3} parent=1 // loop_body
      %s14 = ssub.s32 %s9, 1
      %s15 = ssub.s32 %s9, 2
      %s16 = sadd.s32 %s9, 1
      %s17 = ssub.s32 %s9, %s16
      %p18 = scmp.eq.s32.totalorder %s17, 0
      %s20 = sadd.s32 %s19, 1
      %s21 = scalar_select %p18, %s19, %s20
      %p24 = pneg %p18
      %p25 = scmp.eq.s32.totalorder %s9, 3
      %p26 = por %p24, %p25
      %p27 = scmp.ne.s32.totalorder %s19, %s22
      %p28 = scmp.eq.s32.totalorder %s9, 0
      %p29 = por %p27, %p28
      %p30 = scmp.ne.s32.totalorder %s19, %s22
      %p31 = scmp.eq.s32.totalorder %s14, 3
      %p32 = por %p30, %p31
      %p33 = scmp.ne.s32.totalorder %s22, %s23
      %p34 = scmp.eq.s32.totalorder %s14, 0
      %p35 = por %p33, %p34
      %p36 = scmp.ne.s32.totalorder %s22, %s23
      %p37 = scmp.eq.s32.totalorder %s15, 3
      %p38 = por %p36, %p37
      %p40 = scmp.ne.s32.totalorder %s23, %s39
      %p41 = scmp.eq.s32.totalorder %s15, 0
      %p42 = por %p40, %p41
      %s44 = sadd.s32 %s43, 1
      %p47 = scmp.eq.s32.totalorder %s9, 3
      %p48 = scmp.ne.s32.totalorder %s43, %s45
      %p49 = scmp.eq.s32.totalorder %s9, 0
      %p50 = por %p48, %p49
      %p51 = scmp.ne.s32.totalorder %s43, %s45
      %p52 = scmp.eq.s32.totalorder %s14, 3
      %p53 = por %p51, %p52
      %p54 = scmp.ne.s32.totalorder %s45, %s46
      %p55 = scmp.eq.s32.totalorder %s14, 0
      %p56 = por %p54, %p55
      %p57 = scmp.ne.s32.totalorder %s45, %s46
      %p58 = scmp.eq.s32.totalorder %s15, 3
      %p59 = por %p57, %p58
      %p61 = scmp.ne.s32.totalorder %s46, %s60
      %p62 = scmp.eq.s32.totalorder %s15, 0
      %p63 = por %p61, %p62
      %s65 = sadd.s32 %s64, 1
      %p68 = scmp.eq.s32.totalorder %s9, 3
      %p69 = scmp.ne.s32.totalorder %s64, %s66
      %p70 = scmp.eq.s32.totalorder %s9, 0
      %p71 = por %p69, %p70
      %p72 = scmp.ne.s32.totalorder %s64, %s66
      %p73 = scmp.eq.s32.totalorder %s14, 3
      %p74 = por %p72, %p73
      %p75 = scmp.ne.s32.totalorder %s66, %s67
      %p76 = scmp.eq.s32.totalorder %s14, 0
      %p77 = por %p75, %p76
      %p78 = scmp.ne.s32.totalorder %s66, %s67
      %p79 = scmp.eq.s32.totalorder %s15, 3
      %p80 = por %p78, %p79
      %p82 = scmp.ne.s32.totalorder %s67, %s81
      %p83 = scmp.eq.s32.totalorder %s15, 0
      %p84 = por %p82, %p83
      %s85 = ssub.s32 %s9, %s16
      %p86 = scmp.eq.s32.totalorder %s85, 0
      %s88 = sadd.s32 %s87, 1
      %s89 = scalar_select %p86, %s87, %s88
      %p92 = pneg %p86
      %p93 = scmp.eq.s32.totalorder %s9, 3
      %p94 = por %p92, %p93
      %p95 = scmp.ne.s32.totalorder %s87, %s90
      %p96 = scmp.eq.s32.totalorder %s9, 0
      %p97 = por %p95, %p96
      %p98 = scmp.ne.s32.totalorder %s87, %s90
      %p99 = scmp.eq.s32.totalorder %s14, 3
      %p100 = por %p98, %p99
      %p101 = scmp.ne.s32.totalorder %s90, %s91
      %p102 = scmp.eq.s32.totalorder %s14, 0
      %p103 = por %p101, %p102
      %p104 = scmp.ne.s32.totalorder %s90, %s91
      %p105 = scmp.eq.s32.totalorder %s15, 3
      %p106 = por %p104, %p105
      %p108 = scmp.ne.s32.totalorder %s91, %s107
      %p109 = scmp.eq.s32.totalorder %s15, 0
      %p110 = por %p108, %p109
      %p111 = scmp.le.s32.totalorder 1, %s9
      %p112 = scmp.lt.s32.totalorder %s9, 5
      %p113 = pnand %p111, %p112
      %p114 = pneg %p113
      // Predicated region
      $region9: #{lenet5_forward.3} parent=5 // pred_check
        _
      $region10: #{lenet5_forward.3} parent=5 // pred_check_branch
        %116 = sbr.rel (%p113) target = $region12
      $region11: #{lenet5_forward.3} parent=5 // pred_region
        %s117 = ssub.s32 %s9, 1
        // Predicated region
        $region13: #{lenet5_forward.3} parent=11 // pred_check
          %p118 = pneg %p56
        $region14: #{lenet5_forward.3} parent=11 // pred_check_branch
          %120 = sbr.rel (%p118) target = $region16
        $region15: #{lenet5_forward.3} parent=11 // pred_region
          _
        $region16: #{lenet5_forward.3} parent=11 // pred_fallthru
          _
        // Predicated region
        $region17: #{lenet5_forward.3} parent=11 // pred_check
          %p121 = pneg %p77
        $region18: #{lenet5_forward.3} parent=11 // pred_check_branch
          %123 = sbr.rel (%p121) target = $region20
        $region19: #{lenet5_forward.3} parent=11 // pred_region
          _
        $region20: #{lenet5_forward.3} parent=11 // pred_fallthru
          _
      $region12: #{lenet5_forward.3} parent=5 // pred_fallthru
        _
      %p124 = scmp.lt.s32.totalorder %s9, 4
      // Predicated region
      $region21: #{lenet5_forward.3} parent=5 // pred_check
        %p125 = pneg %p124
      $region22: #{lenet5_forward.3} parent=5 // pred_check_branch
        %127 = sbr.rel (%p125) target = $region24
      $region23: #{lenet5_forward.3} parent=5 // pred_region
        // Predicated region
        $region25: #{lenet5_forward.3} parent=23 // pred_check
          %p128 = pneg %p29
        $region26: #{lenet5_forward.3} parent=23 // pred_check_branch
          %130 = sbr.rel (%p128) target = $region28
        $region27: #{lenet5_forward.3} parent=23 // pred_region
          %s131 = sand.u32 %s19, 1
          %s132 = sand.u32 %s19, 1
          %s133 = smul.addr %s132, 512
          %s134 = scalar_lea.vmem [#allocation2], %s133
          %s135 = smul.u32 16, %s9
          %s136 = smul.addr %s135, 8
          %s137 = scalar_lea.vmem %s0, %s136
          // Predicated region
          $region29: #{lenet5_forward.3} parent=27 // pred_check
            _
          $region30: #{lenet5_forward.3} parent=27 // pred_check_branch
            %139 = sbr.rel (0) target = $region32
          $region31: #{lenet5_forward.3} parent=27 // pred_region
            // Predicated region
            $region33: #{lenet5_forward.3} parent=31 // pred_check
              _
            $region34: #{lenet5_forward.3} parent=31 // pred_check_branch
              %141 = sbr.rel (0) target = $region36
            $region35: #{lenet5_forward.3} parent=31 // pred_region
              // Predicated region
              $region48: #{lenet5_forward.3} parent=35 // pred_check
                _
              $region49: #{lenet5_forward.3} parent=35 // pred_check_branch
                %282 = sbr.rel (0) target = $region51
              $region50: #{lenet5_forward.3} parent=35 // pred_region
                loop: start=0, step=1, limit=1
                $region52: #{lenet5_forward.3} parent=50 // loop_pre_header
                  _
                $region53: #{lenet5_forward.3} parent=50 // loop_header
                  %s284 = sphi 0, %s288
                  %p285 = scmp.ge.s32.totalorder %s284, 1
                  %s289 = sphi %s137, %s137
                  %s290 = sphi %s134, %s134
                $region54: #{lenet5_forward.3} parent=50 // loop_header_branch
                  %287 = sbr.rel (%p285) target = $region58
                $region55: #{lenet5_forward.3} parent=50 // loop_body
                  %v291 = vld [vmem:[%s289] sm:$0xff]
                  %292 = vst [vmem:[%s290] sm:$0xff] %v291
                  %v293 = vld [vmem:[%s289 + $0x8] sm:$0xff]
                  %294 = vst [vmem:[%s290 + $0x8] sm:$0xff] %v293
                  %v295 = vld [vmem:[%s289 + $0x10] sm:$0xff]
                  %296 = vst [vmem:[%s290 + $0x10] sm:$0xff] %v295
                  %v297 = vld [vmem:[%s289 + $0x18] sm:$0xff]
                  %298 = vst [vmem:[%s290 + $0x18] sm:$0xff] %v297
                  %v299 = vld [vmem:[%s289 + $0x20] sm:$0xff]
                  %300 = vst [vmem:[%s290 + $0x20] sm:$0xff] %v299
                  %v301 = vld [vmem:[%s289 + $0x28] sm:$0xff]
                  %302 = vst [vmem:[%s290 + $0x28] sm:$0xff] %v301
                  %v303 = vld [vmem:[%s289 + $0x30] sm:$0xff]
                  %304 = vst [vmem:[%s290 + $0x30] sm:$0xff] %v303
                  %v305 = vld [vmem:[%s289 + $0x38] sm:$0xff]
                  %306 = vst [vmem:[%s290 + $0x38] sm:$0xff] %v305
                  %v307 = vld [vmem:[%s289 + $0x40] sm:$0xff]
                  %308 = vst [vmem:[%s290 + $0x40] sm:$0xff] %v307
                  %v309 = vld [vmem:[%s289 + $0x48] sm:$0xff]
                  %310 = vst [vmem:[%s290 + $0x48] sm:$0xff] %v309
                  %v311 = vld [vmem:[%s289 + $0x50] sm:$0xff]
                  %312 = vst [vmem:[%s290 + $0x50] sm:$0xff] %v311
                  %v313 = vld [vmem:[%s289 + $0x58] sm:$0xff]
                  %314 = vst [vmem:[%s290 + $0x58] sm:$0xff] %v313
                  %v315 = vld [vmem:[%s289 + $0x60] sm:$0xff]
                  %316 = vst [vmem:[%s290 + $0x60] sm:$0xff] %v315
                  %v317 = vld [vmem:[%s289 + $0x68] sm:$0xff]
                  %318 = vst [vmem:[%s290 + $0x68] sm:$0xff] %v317
                  %v319 = vld [vmem:[%s289 + $0x70] sm:$0xff]
                  %320 = vst [vmem:[%s290 + $0x70] sm:$0xff] %v319
                  %v321 = vld [vmem:[%s289 + $0x78] sm:$0xff]
                  %322 = vst [vmem:[%s290 + $0x78] sm:$0xff] %v321
                  %v323 = vld [vmem:[%s289 + $0x200] sm:$0xff]
                  %324 = vst [vmem:[%s290 + $0x80] sm:$0xff] %v323
                  %v325 = vld [vmem:[%s289 + $0x208] sm:$0xff]
                  %326 = vst [vmem:[%s290 + $0x88] sm:$0xff] %v325
                  %v327 = vld [vmem:[%s289 + $0x210] sm:$0xff]
                  %328 = vst [vmem:[%s290 + $0x90] sm:$0xff] %v327
                  %v329 = vld [vmem:[%s289 + $0x218] sm:$0xff]
                  %330 = vst [vmem:[%s290 + $0x98] sm:$0xff] %v329
                  %v331 = vld [vmem:[%s289 + $0x220] sm:$0xff]
                  %332 = vst [vmem:[%s290 + $0xa0] sm:$0xff] %v331
                  %v333 = vld [vmem:[%s289 + $0x228] sm:$0xff]
                  %334 = vst [vmem:[%s290 + $0xa8] sm:$0xff] %v333
                  %v335 = vld [vmem:[%s289 + $0x230] sm:$0xff]
                  %336 = vst [vmem:[%s290 + $0xb0] sm:$0xff] %v335
                  %v337 = vld [vmem:[%s289 + $0x238] sm:$0xff]
                  %338 = vst [vmem:[%s290 + $0xb8] sm:$0xff] %v337
                  %v339 = vld [vmem:[%s289 + $0x240] sm:$0xff]
                  %340 = vst [vmem:[%s290 + $0xc0] sm:$0xff] %v339
                  %v341 = vld [vmem:[%s289 + $0x248] sm:$0xff]
                  %342 = vst [vmem:[%s290 + $0xc8] sm:$0xff] %v341
                  %v343 = vld [vmem:[%s289 + $0x250] sm:$0xff]
                  %344 = vst [vmem:[%s290 + $0xd0] sm:$0xff] %v343
                  %v345 = vld [vmem:[%s289 + $0x258] sm:$0xff]
                  %346 = vst [vmem:[%s290 + $0xd8] sm:$0xff] %v345
                  %v347 = vld [vmem:[%s289 + $0x260] sm:$0xff]
                  %348 = vst [vmem:[%s290 + $0xe0] sm:$0xff] %v347
                  %v349 = vld [vmem:[%s289 + $0x268] sm:$0xff]
                  %350 = vst [vmem:[%s290 + $0xe8] sm:$0xff] %v349
                  %v351 = vld [vmem:[%s289 + $0x270] sm:$0xff]
                  %352 = vst [vmem:[%s290 + $0xf0] sm:$0xff] %v351
                  %v353 = vld [vmem:[%s289 + $0x278] sm:$0xff]
                  %354 = vst [vmem:[%s290 + $0xf8] sm:$0xff] %v353
                  %v355 = vld [vmem:[%s289 + $0x400] sm:$0xff]
                  %356 = vst [vmem:[%s290 + $0x100] sm:$0xff] %v355
                  %v357 = vld [vmem:[%s289 + $0x408] sm:$0xff]
                  %358 = vst [vmem:[%s290 + $0x108] sm:$0xff] %v357
                  %v359 = vld [vmem:[%s289 + $0x410] sm:$0xff]
                  %360 = vst [vmem:[%s290 + $0x110] sm:$0xff] %v359
                  %v361 = vld [vmem:[%s289 + $0x418] sm:$0xff]
                  %362 = vst [vmem:[%s290 + $0x118] sm:$0xff] %v361
                  %v363 = vld [vmem:[%s289 + $0x420] sm:$0xff]
                  %364 = vst [vmem:[%s290 + $0x120] sm:$0xff] %v363
                  %v365 = vld [vmem:[%s289 + $0x428] sm:$0xff]
                  %366 = vst [vmem:[%s290 + $0x128] sm:$0xff] %v365
                  %v367 = vld [vmem:[%s289 + $0x430] sm:$0xff]
                  %368 = vst [vmem:[%s290 + $0x130] sm:$0xff] %v367
                  %v369 = vld [vmem:[%s289 + $0x438] sm:$0xff]
                  %370 = vst [vmem:[%s290 + $0x138] sm:$0xff] %v369
                  %v371 = vld [vmem:[%s289 + $0x440] sm:$0xff]
                  %372 = vst [vmem:[%s290 + $0x140] sm:$0xff] %v371
                  %v373 = vld [vmem:[%s289 + $0x448] sm:$0xff]
                  %374 = vst [vmem:[%s290 + $0x148] sm:$0xff] %v373
                  %v375 = vld [vmem:[%s289 + $0x450] sm:$0xff]
                  %376 = vst [vmem:[%s290 + $0x150] sm:$0xff] %v375
                  %v377 = vld [vmem:[%s289 + $0x458] sm:$0xff]
                  %378 = vst [vmem:[%s290 + $0x158] sm:$0xff] %v377
                  %v379 = vld [vmem:[%s289 + $0x460] sm:$0xff]
                  %380 = vst [vmem:[%s290 + $0x160] sm:$0xff] %v379
                  %v381 = vld [vmem:[%s289 + $0x468] sm:$0xff]
                  %382 = vst [vmem:[%s290 + $0x168] sm:$0xff] %v381
                  %v383 = vld [vmem:[%s289 + $0x470] sm:$0xff]
                  %384 = vst [vmem:[%s290 + $0x170] sm:$0xff] %v383
                  %v385 = vld [vmem:[%s289 + $0x478] sm:$0xff]
                  %386 = vst [vmem:[%s290 + $0x178] sm:$0xff] %v385
                  %v387 = vld [vmem:[%s289 + $0x600] sm:$0xff]
                  %388 = vst [vmem:[%s290 + $0x180] sm:$0xff] %v387
                  %v389 = vld [vmem:[%s289 + $0x608] sm:$0xff]
                  %390 = vst [vmem:[%s290 + $0x188] sm:$0xff] %v389
                  %v391 = vld [vmem:[%s289 + $0x610] sm:$0xff]
                  %392 = vst [vmem:[%s290 + $0x190] sm:$0xff] %v391
                  %v393 = vld [vmem:[%s289 + $0x618] sm:$0xff]
                  %394 = vst [vmem:[%s290 + $0x198] sm:$0xff] %v393
                  %v395 = vld [vmem:[%s289 + $0x620] sm:$0xff]
                  %396 = vst [vmem:[%s290 + $0x1a0] sm:$0xff] %v395
                  %v397 = vld [vmem:[%s289 + $0x628] sm:$0xff]
                  %398 = vst [vmem:[%s290 + $0x1a8] sm:$0xff] %v397
                  %v399 = vld [vmem:[%s289 + $0x630] sm:$0xff]
                  %400 = vst [vmem:[%s290 + $0x1b0] sm:$0xff] %v399
                  %v401 = vld [vmem:[%s289 + $0x638] sm:$0xff]
                  %402 = vst [vmem:[%s290 + $0x1b8] sm:$0xff] %v401
                  %v403 = vld [vmem:[%s289 + $0x640] sm:$0xff]
                  %404 = vst [vmem:[%s290 + $0x1c0] sm:$0xff] %v403
                  %v405 = vld [vmem:[%s289 + $0x648] sm:$0xff]
                  %406 = vst [vmem:[%s290 + $0x1c8] sm:$0xff] %v405
                  %v407 = vld [vmem:[%s289 + $0x650] sm:$0xff]
                  %408 = vst [vmem:[%s290 + $0x1d0] sm:$0xff] %v407
                  %v409 = vld [vmem:[%s289 + $0x658] sm:$0xff]
                  %410 = vst [vmem:[%s290 + $0x1d8] sm:$0xff] %v409
                  %v411 = vld [vmem:[%s289 + $0x660] sm:$0xff]
                  %412 = vst [vmem:[%s290 + $0x1e0] sm:$0xff] %v411
                  %v413 = vld [vmem:[%s289 + $0x668] sm:$0xff]
                  %414 = vst [vmem:[%s290 + $0x1e8] sm:$0xff] %v413
                  %v415 = vld [vmem:[%s289 + $0x670] sm:$0xff]
                  %416 = vst [vmem:[%s290 + $0x1f0] sm:$0xff] %v415
                  %v417 = vld [vmem:[%s289 + $0x678] sm:$0xff]
                  %418 = vst [vmem:[%s290 + $0x1f8] sm:$0xff] %v417
                $region56: #{lenet5_forward.3} parent=50 // loop_footer
                  %s288 = sadd.s32 1, %s284
                $region57: #{lenet5_forward.3} parent=50 // loop_footer_branch
                  %283 = sbr.rel target = $region53
                $region58: #{lenet5_forward.3} parent=50 // loop_exit
                  _
              $region51: #{lenet5_forward.3} parent=35 // pred_fallthru
                _
              // Predicated region
              $region59: #{lenet5_forward.3} parent=35 // pred_check
                _
              $region60: #{lenet5_forward.3} parent=35 // pred_check_branch
                %420 = sbr.rel target = $region62
              $region61: #{lenet5_forward.3} parent=35 // pred_region
                _
              $region62: #{lenet5_forward.3} parent=35 // pred_fallthru
                _
            $region36: #{lenet5_forward.3} parent=31 // pred_fallthru
              _
            // Predicated region
            $region37: #{lenet5_forward.3} parent=31 // pred_check
              _
            $region38: #{lenet5_forward.3} parent=31 // pred_check_branch
              %143 = sbr.rel target = $region40
            $region39: #{lenet5_forward.3} parent=31 // pred_region
              loop: start=0, step=1, limit=1
              $region41: #{lenet5_forward.3} parent=39 // loop_pre_header
                _
              $region42: #{lenet5_forward.3} parent=39 // loop_header
                %s146 = sphi 0, %s150
                %p147 = scmp.ge.s32.totalorder %s146, 1
                %s151 = sphi %s137, %s137
                %s152 = sphi %s134, %s134
              $region43: #{lenet5_forward.3} parent=39 // loop_header_branch
                %149 = sbr.rel (%p147) target = $region47
              $region44: #{lenet5_forward.3} parent=39 // loop_body
                %v153 = vld [vmem:[%s151] sm:$0xff]
                %154 = vst [vmem:[%s152] sm:$0xff] %v153
                %v155 = vld [vmem:[%s151 + $0x8] sm:$0xff]
                %156 = vst [vmem:[%s152 + $0x8] sm:$0xff] %v155
                %v157 = vld [vmem:[%s151 + $0x10] sm:$0xff]
                %158 = vst [vmem:[%s152 + $0x10] sm:$0xff] %v157
                %v159 = vld [vmem:[%s151 + $0x18] sm:$0xff]
                %160 = vst [vmem:[%s152 + $0x18] sm:$0xff] %v159
                %v161 = vld [vmem:[%s151 + $0x20] sm:$0xff]
                %162 = vst [vmem:[%s152 + $0x20] sm:$0xff] %v161
                %v163 = vld [vmem:[%s151 + $0x28] sm:$0xff]
                %164 = vst [vmem:[%s152 + $0x28] sm:$0xff] %v163
                %v165 = vld [vmem:[%s151 + $0x30] sm:$0xff]
                %166 = vst [vmem:[%s152 + $0x30] sm:$0xff] %v165
                %v167 = vld [vmem:[%s151 + $0x38] sm:$0xff]
                %168 = vst [vmem:[%s152 + $0x38] sm:$0xff] %v167
                %v169 = vld [vmem:[%s151 + $0x40] sm:$0xff]
                %170 = vst [vmem:[%s152 + $0x40] sm:$0xff] %v169
                %v171 = vld [vmem:[%s151 + $0x48] sm:$0xff]
                %172 = vst [vmem:[%s152 + $0x48] sm:$0xff] %v171
                %v173 = vld [vmem:[%s151 + $0x50] sm:$0xff]
                %174 = vst [vmem:[%s152 + $0x50] sm:$0xff] %v173
                %v175 = vld [vmem:[%s151 + $0x58] sm:$0xff]
                %176 = vst [vmem:[%s152 + $0x58] sm:$0xff] %v175
                %v177 = vld [vmem:[%s151 + $0x60] sm:$0xff]
                %178 = vst [vmem:[%s152 + $0x60] sm:$0xff] %v177
                %v179 = vld [vmem:[%s151 + $0x68] sm:$0xff]
                %180 = vst [vmem:[%s152 + $0x68] sm:$0xff] %v179
                %v181 = vld [vmem:[%s151 + $0x70] sm:$0xff]
                %182 = vst [vmem:[%s152 + $0x70] sm:$0xff] %v181
                %v183 = vld [vmem:[%s151 + $0x78] sm:$0xff]
                %184 = vst [vmem:[%s152 + $0x78] sm:$0xff] %v183
                %v185 = vld [vmem:[%s151 + $0x200] sm:$0xff]
                %186 = vst [vmem:[%s152 + $0x80] sm:$0xff] %v185
                %v187 = vld [vmem:[%s151 + $0x208] sm:$0xff]
                %188 = vst [vmem:[%s152 + $0x88] sm:$0xff] %v187
                %v189 = vld [vmem:[%s151 + $0x210] sm:$0xff]
                %190 = vst [vmem:[%s152 + $0x90] sm:$0xff] %v189
                %v191 = vld [vmem:[%s151 + $0x218] sm:$0xff]
                %192 = vst [vmem:[%s152 + $0x98] sm:$0xff] %v191
                %v193 = vld [vmem:[%s151 + $0x220] sm:$0xff]
                %194 = vst [vmem:[%s152 + $0xa0] sm:$0xff] %v193
                %v195 = vld [vmem:[%s151 + $0x228] sm:$0xff]
                %196 = vst [vmem:[%s152 + $0xa8] sm:$0xff] %v195
                %v197 = vld [vmem:[%s151 + $0x230] sm:$0xff]
                %198 = vst [vmem:[%s152 + $0xb0] sm:$0xff] %v197
                %v199 = vld [vmem:[%s151 + $0x238] sm:$0xff]
                %200 = vst [vmem:[%s152 + $0xb8] sm:$0xff] %v199
                %v201 = vld [vmem:[%s151 + $0x240] sm:$0xff]
                %202 = vst [vmem:[%s152 + $0xc0] sm:$0xff] %v201
                %v203 = vld [vmem:[%s151 + $0x248] sm:$0xff]
                %204 = vst [vmem:[%s152 + $0xc8] sm:$0xff] %v203
                %v205 = vld [vmem:[%s151 + $0x250] sm:$0xff]
                %206 = vst [vmem:[%s152 + $0xd0] sm:$0xff] %v205
                %v207 = vld [vmem:[%s151 + $0x258] sm:$0xff]
                %208 = vst [vmem:[%s152 + $0xd8] sm:$0xff] %v207
                %v209 = vld [vmem:[%s151 + $0x260] sm:$0xff]
                %210 = vst [vmem:[%s152 + $0xe0] sm:$0xff] %v209
                %v211 = vld [vmem:[%s151 + $0x268] sm:$0xff]
                %212 = vst [vmem:[%s152 + $0xe8] sm:$0xff] %v211
                %v213 = vld [vmem:[%s151 + $0x270] sm:$0xff]
                %214 = vst [vmem:[%s152 + $0xf0] sm:$0xff] %v213
                %v215 = vld [vmem:[%s151 + $0x278] sm:$0xff]
                %216 = vst [vmem:[%s152 + $0xf8] sm:$0xff] %v215
                %v217 = vld [vmem:[%s151 + $0x400] sm:$0xff]
                %218 = vst [vmem:[%s152 + $0x100] sm:$0xff] %v217
                %v219 = vld [vmem:[%s151 + $0x408] sm:$0xff]
                %220 = vst [vmem:[%s152 + $0x108] sm:$0xff] %v219
                %v221 = vld [vmem:[%s151 + $0x410] sm:$0xff]
                %222 = vst [vmem:[%s152 + $0x110] sm:$0xff] %v221
                %v223 = vld [vmem:[%s151 + $0x418] sm:$0xff]
                %224 = vst [vmem:[%s152 + $0x118] sm:$0xff] %v223
                %v225 = vld [vmem:[%s151 + $0x420] sm:$0xff]
                %226 = vst [vmem:[%s152 + $0x120] sm:$0xff] %v225
                %v227 = vld [vmem:[%s151 + $0x428] sm:$0xff]
                %228 = vst [vmem:[%s152 + $0x128] sm:$0xff] %v227
                %v229 = vld [vmem:[%s151 + $0x430] sm:$0xff]
                %230 = vst [vmem:[%s152 + $0x130] sm:$0xff] %v229
                %v231 = vld [vmem:[%s151 + $0x438] sm:$0xff]
                %232 = vst [vmem:[%s152 + $0x138] sm:$0xff] %v231
                %v233 = vld [vmem:[%s151 + $0x440] sm:$0xff]
                %234 = vst [vmem:[%s152 + $0x140] sm:$0xff] %v233
                %v235 = vld [vmem:[%s151 + $0x448] sm:$0xff]
                %236 = vst [vmem:[%s152 + $0x148] sm:$0xff] %v235
                %v237 = vld [vmem:[%s151 + $0x450] sm:$0xff]
                %238 = vst [vmem:[%s152 + $0x150] sm:$0xff] %v237
                %v239 = vld [vmem:[%s151 + $0x458] sm:$0xff]
                %240 = vst [vmem:[%s152 + $0x158] sm:$0xff] %v239
                %v241 = vld [vmem:[%s151 + $0x460] sm:$0xff]
                %242 = vst [vmem:[%s152 + $0x160] sm:$0xff] %v241
                %v243 = vld [vmem:[%s151 + $0x468] sm:$0xff]
                %244 = vst [vmem:[%s152 + $0x168] sm:$0xff] %v243
                %v245 = vld [vmem:[%s151 + $0x470] sm:$0xff]
                %246 = vst [vmem:[%s152 + $0x170] sm:$0xff] %v245
                %v247 = vld [vmem:[%s151 + $0x478] sm:$0xff]
                %248 = vst [vmem:[%s152 + $0x178] sm:$0xff] %v247
                %v249 = vld [vmem:[%s151 + $0x600] sm:$0xff]
                %250 = vst [vmem:[%s152 + $0x180] sm:$0xff] %v249
                %v251 = vld [vmem:[%s151 + $0x608] sm:$0xff]
                %252 = vst [vmem:[%s152 + $0x188] sm:$0xff] %v251
                %v253 = vld [vmem:[%s151 + $0x610] sm:$0xff]
                %254 = vst [vmem:[%s152 + $0x190] sm:$0xff] %v253
                %v255 = vld [vmem:[%s151 + $0x618] sm:$0xff]
                %256 = vst [vmem:[%s152 + $0x198] sm:$0xff] %v255
                %v257 = vld [vmem:[%s151 + $0x620] sm:$0xff]
                %258 = vst [vmem:[%s152 + $0x1a0] sm:$0xff] %v257
                %v259 = vld [vmem:[%s151 + $0x628] sm:$0xff]
                %260 = vst [vmem:[%s152 + $0x1a8] sm:$0xff] %v259
                %v261 = vld [vmem:[%s151 + $0x630] sm:$0xff]
                %262 = vst [vmem:[%s152 + $0x1b0] sm:$0xff] %v261
                %v263 = vld [vmem:[%s151 + $0x638] sm:$0xff]
                %264 = vst [vmem:[%s152 + $0x1b8] sm:$0xff] %v263
                %v265 = vld [vmem:[%s151 + $0x640] sm:$0xff]
                %266 = vst [vmem:[%s152 + $0x1c0] sm:$0xff] %v265
                %v267 = vld [vmem:[%s151 + $0x648] sm:$0xff]
                %268 = vst [vmem:[%s152 + $0x1c8] sm:$0xff] %v267
                %v269 = vld [vmem:[%s151 + $0x650] sm:$0xff]
                %270 = vst [vmem:[%s152 + $0x1d0] sm:$0xff] %v269
                %v271 = vld [vmem:[%s151 + $0x658] sm:$0xff]
                %272 = vst [vmem:[%s152 + $0x1d8] sm:$0xff] %v271
                %v273 = vld [vmem:[%s151 + $0x660] sm:$0xff]
                %274 = vst [vmem:[%s152 + $0x1e0] sm:$0xff] %v273
                %v275 = vld [vmem:[%s151 + $0x668] sm:$0xff]
                %276 = vst [vmem:[%s152 + $0x1e8] sm:$0xff] %v275
                %v277 = vld [vmem:[%s151 + $0x670] sm:$0xff]
                %278 = vst [vmem:[%s152 + $0x1f0] sm:$0xff] %v277
                %v279 = vld [vmem:[%s151 + $0x678] sm:$0xff]
                %280 = vst [vmem:[%s152 + $0x1f8] sm:$0xff] %v279
              $region45: #{lenet5_forward.3} parent=39 // loop_footer
                %s150 = sadd.s32 1, %s146
              $region46: #{lenet5_forward.3} parent=39 // loop_footer_branch
                %145 = sbr.rel target = $region42
              $region47: #{lenet5_forward.3} parent=39 // loop_exit
                _
            $region40: #{lenet5_forward.3} parent=31 // pred_fallthru
              _
          $region32: #{lenet5_forward.3} parent=27 // pred_fallthru
            _
          %421 = vnop
        $region28: #{lenet5_forward.3} parent=23 // pred_fallthru
          _
      $region24: #{lenet5_forward.3} parent=5 // pred_fallthru
        _
      %p422 = scmp.le.s32.totalorder 1, %s9
      %p423 = scmp.lt.s32.totalorder %s9, 5
      %p424 = pnand %p422, %p423
      %p425 = pneg %p424
      // Predicated region
      $region63: #{lenet5_forward.3} parent=5 // pred_check
        _
      $region64: #{lenet5_forward.3} parent=5 // pred_check_branch
        %427 = sbr.rel (%p424) target = $region66
      $region65: #{lenet5_forward.3} parent=5 // pred_region
        %s428 = ssub.s32 %s9, 1
        %s429 = sand.u32 %s22, 1
        %s430 = sand.u32 %s22, 1
        %s431 = smul.addr %s430, 512
        %s432 = scalar_lea.vmem [#allocation2], %s431
        // Predicated region
        $region67: #{lenet5_forward.3} parent=65 // pred_check
          %p433 = pneg %p35
        $region68: #{lenet5_forward.3} parent=65 // pred_check_branch
          %435 = sbr.rel (%p433) target = $region70
        $region69: #{lenet5_forward.3} parent=65 // pred_region
          _
        $region70: #{lenet5_forward.3} parent=65 // pred_fallthru
          _
        %s436 = sand.u32 %s22, 1
        %s437 = sand.u32 %s22, 1
        %s438 = smul.addr %s437, 512
        %s439 = scalar_lea.vmem [#allocation2], %s438
        %p440 = pneg %p35
        %p441 = pneg %p32
        %p442 = pneg %p56
        %p443 = pneg %p53
        %p444 = pneg %p77
        %p445 = pneg %p74
        %p446 = pneg %p103
        %p447 = pneg %p100
        %s448 = smul.u32 16, %s14
        %p449 = scmp.lt.s32.totalorder %s448, 63
        %s450 = scalar_select %p449, %s448, 63
        %s451 = smul.addr %s450, 8
        %s452 = scalar_lea.vmem %s3, %s451
        %s453 = smul.u32 16, %s14
        %s454 = smul.u32 16, %s14
        %p455 = scmp.lt.s32.totalorder %s454, 63
        %s456 = scalar_select %p455, %s454, 63
        %s457 = smul.addr %s456, 8
        %s458 = scalar_lea.vmem %s3, %s457
        %s459 = smul.u32 16, %s14
        %v460 = vld [vmem:[%s1] sm:$0xff]
        %v461 = vld [vmem:[%s1 + $0x8] sm:$0xff]
        %v462 = vld [vmem:[%s1 + $0x10] sm:$0xff]
        %v463 = vld [vmem:[%s1 + $0x18] sm:$0x1]
        %v464 = vld [vmem:[%s432] sm:$0xff]
        %v465 = vld [vmem:[%s432 + $0x8] sm:$0xff]
        %v466 = vld [vmem:[%s432 + $0x10] sm:$0xff]
        %v467 = vld [vmem:[%s432 + $0x18] sm:$0xff]
        %v468 = vld [vmem:[%s432 + $0x20] sm:$0xff]
        %v469 = vld [vmem:[%s432 + $0x28] sm:$0xff]
        %v470 = vld [vmem:[%s432 + $0x30] sm:$0xff]
        %v471 = vld [vmem:[%s432 + $0x38] sm:$0xff]
        %v472 = vld [vmem:[%s432 + $0x40] sm:$0xff]
        %v473 = vld [vmem:[%s432 + $0x48] sm:$0xff]
        %v474 = vld [vmem:[%s432 + $0x50] sm:$0xff]
        %v475 = vld [vmem:[%s432 + $0x58] sm:$0xff]
        %v476 = vld [vmem:[%s432 + $0x60] sm:$0xff]
        %v477 = vld [vmem:[%s432 + $0x68] sm:$0xff]
        %v478 = vld [vmem:[%s432 + $0x70] sm:$0xff]
        %v479 = vld [vmem:[%s432 + $0x78] sm:$0xff]
        %vm480 = vcmask 203776
        %v482 = vsel %vm480, %v464, 0
        %v485 = vsel %vm480, %v465, 0
        %v488 = vsel %vm480, %v466, 0
        %v491 = vsel %vm480, %v467, 0
        %v494 = vsel %vm480, %v468, 0
        %v497 = vsel %vm480, %v469, 0
        %v500 = vsel %vm480, %v470, 0
        %v503 = vsel %vm480, %v471, 0
        %v506 = vsel %vm480, %v472, 0
        %v509 = vsel %vm480, %v473, 0
        %v512 = vsel %vm480, %v474, 0
        %v515 = vsel %vm480, %v475, 0
        %v518 = vsel %vm480, %v476, 0
        %v521 = vsel %vm480, %v477, 0
        %v524 = vsel %vm480, %v478, 0
        %v527 = vsel %vm480, %v479, 0
        %vm529 = vcmask 1040384
        %v531 = vsel %vm529, %v463, 0
        %533 = vmatprep.subr.mxu0 0.0
        %534 = vmatpush1.msra.mxu0 %v460
        %535 = vmatprep.subr.mxu0 0.0
        %536 = vmatpush1.msra.mxu0 %v461
        %537 = vmatprep.subr.mxu0 0.0
        %538 = vmatpush1.msra.mxu0 %v462
        %539 = vmatprep.subr.mxu0 0.0
        %540 = vmatpush1.msra.mxu0 %v531
        %541 = vmatprep.subr.mxu0 0.0
        %542 = vmatpush1.msra.mxu0 0.0
        %543 = vmatprep.subr.mxu0 0.0
        %544 = vmatpush1.msra.mxu0 0.0
        %545 = vmatprep.subr.mxu0 0.0
        %546 = vmatpush1.msra.mxu0 0.0
        %547 = vmatprep.subr.mxu0 0.0
        %548 = vmatpush1.msra.mxu0 0.0
        %549 = vmatprep.subr.mxu0 0.0
        %550 = vmatpush1.msra.mxu0 0.0
        %551 = vmatprep.subr.mxu0 0.0
        %552 = vmatpush1.msra.mxu0 0.0
        %553 = vmatprep.subr.mxu0 0.0
        %554 = vmatpush1.msra.mxu0 0.0
        %555 = vmatprep.subr.mxu0 0.0
        %556 = vmatpush1.msra.mxu0 0.0
        %557 = vmatprep.subr.mxu0 0.0
        %558 = vmatpush1.msra.mxu0 0.0
        %559 = vmatprep.subr.mxu0 0.0
        %560 = vmatpush1.msra.mxu0 0.0
        %561 = vmatprep.subr.mxu0 0.0
        %562 = vmatpush1.msra.mxu0 0.0
        %563 = vmatprep.subr.mxu0 0.0
        %564 = vmatpush1.msra.mxu0 0.0
        %565 = vmatprep.subr.mxu0 0.0
        %566 = vmatpush1.msra.mxu0 0.0
        %567 = vmatprep.subr.mxu0 0.0
        %568 = vmatpush1.msra.mxu0 0.0
        %569 = vmatprep.subr.mxu0 0.0
        %570 = vmatpush1.msra.mxu0 0.0
        %571 = vmatprep.subr.mxu0 0.0
        %572 = vmatpush1.msra.mxu0 0.0
        %573 = vmatprep.subr.mxu0 0.0
        %574 = vmatpush1.msra.mxu0 0.0
        %575 = vmatprep.subr.mxu0 0.0
        %576 = vmatpush1.msra.mxu0 0.0
        %577 = vmatprep.subr.mxu0 0.0
        %578 = vmatpush1.msra.mxu0 0.0
        %579 = vmatprep.subr.mxu0 0.0
        %580 = vmatpush1.msra.mxu0 0.0
        %581 = vmatprep.subr.mxu0 0.0
        %582 = vmatpush1.msra.mxu0 0.0
        %583 = vmatprep.subr.mxu0 0.0
        %584 = vmatpush1.msra.mxu0 0.0
        %585 = vmatprep.subr.mxu0 0.0
        %586 = vmatpush1.msra.mxu0 0.0
        %587 = vmatprep.subr.mxu0 0.0
        %588 = vmatpush1.msra.mxu0 0.0
        %589 = vmatprep.subr.mxu0 0.0
        %590 = vmatpush1.msra.mxu0 0.0
        %591 = vmatprep.subr.mxu0 0.0
        %592 = vmatpush1.msra.mxu0 0.0
        %593 = vmatprep.subr.mxu0 0.0
        %594 = vmatpush1.msra.mxu0 0.0
        %595 = vmatprep.subr.mxu0 0.0
        %596 = vmatpush1.msra.mxu0 0.0
        %597 = vmatprep.mubr.f32.mxu0 0.0
        %598 = vmatmul.mubr.f32.gmra.mrb[0].mxu0 %v482
        %v599 = vpop.f32.mrb[0].mxu0
        %v600 = vadd.f32 0.0, %v599
        %v601 = vpop.f32.mrb[0].mxu0
        %602 = vmatprep.mubr.f32.mxu0 0.0
        %603 = vmatmul.mubr.f32.gmra.mrb[0].mxu0 %v485
        %v604 = vpop.f32.mrb[0].mxu0
        %v605 = vadd.f32 0.0, %v604
        %v606 = vpop.f32.mrb[0].mxu0
        %607 = vmatprep.mubr.f32.mxu0 0.0
        %608 = vmatmul.mubr.f32.gmra.mrb[0].mxu0 %v488
        %v609 = vpop.f32.mrb[0].mxu0
        %v610 = vadd.f32 0.0, %v609
        %v611 = vpop.f32.mrb[0].mxu0
        %612 = vmatprep.mubr.f32.mxu0 0.0
        %613 = vmatmul.mubr.f32.gmra.mrb[0].mxu0 %v491
        %v614 = vpop.f32.mrb[0].mxu0
        %v615 = vadd.f32 0.0, %v614
        %v616 = vpop.f32.mrb[0].mxu0
        %617 = vmatprep.mubr.f32.mxu0 0.0
        %618 = vmatmul.mubr.f32.gmra.mrb[0].mxu0 %v494
        %v619 = vpop.f32.mrb[0].mxu0
        %v620 = vadd.f32 0.0, %v619
        %v621 = vpop.f32.mrb[0].mxu0
        %622 = vmatprep.mubr.f32.mxu0 0.0
        %623 = vmatmul.mubr.f32.gmra.mrb[0].mxu0 %v497
        %v624 = vpop.f32.mrb[0].mxu0
        %v625 = vadd.f32 0.0, %v624
        %v626 = vpop.f32.mrb[0].mxu0
        %627 = vmatprep.mubr.f32.mxu0 0.0
        %628 = vmatmul.mubr.f32.gmra.mrb[0].mxu0 %v500
        %v629 = vpop.f32.mrb[0].mxu0
        %v630 = vadd.f32 0.0, %v629
        %v631 = vpop.f32.mrb[0].mxu0
        %632 = vmatprep.mubr.f32.mxu0 0.0
        %633 = vmatmul.mubr.f32.gmra.mrb[0].mxu0 %v503
        %v634 = vpop.f32.mrb[0].mxu0
        %v635 = vadd.f32 0.0, %v634
        %v636 = vpop.f32.mrb[0].mxu0
        %637 = vmatprep.mubr.f32.mxu0 0.0
        %638 = vmatmul.mubr.f32.gmra.mrb[0].mxu0 %v506
        %v639 = vpop.f32.mrb[0].mxu0
        %v640 = vadd.f32 0.0, %v639
        %v641 = vpop.f32.mrb[0].mxu0
        %642 = vmatprep.mubr.f32.mxu0 0.0
        %643 = vmatmul.mubr.f32.gmra.mrb[0].mxu0 %v509
        %v644 = vpop.f32.mrb[0].mxu0
        %v645 = vadd.f32 0.0, %v644
        %v646 = vpop.f32.mrb[0].mxu0
        %647 = vmatprep.mubr.f32.mxu0 0.0
        %648 = vmatmul.mubr.f32.gmra.mrb[0].mxu0 %v512
        %v649 = vpop.f32.mrb[0].mxu0
        %v650 = vadd.f32 0.0, %v649
        %v651 = vpop.f32.mrb[0].mxu0
        %652 = vmatprep.mubr.f32.mxu0 0.0
        %653 = vmatmul.mubr.f32.gmra.mrb[0].mxu0 %v515
        %v654 = vpop.f32.mrb[0].mxu0
        %v655 = vadd.f32 0.0, %v654
        %v656 = vpop.f32.mrb[0].mxu0
        %657 = vmatprep.mubr.f32.mxu0 0.0
        %658 = vmatmul.mubr.f32.gmra.mrb[0].mxu0 %v518
        %v659 = vpop.f32.mrb[0].mxu0
        %v660 = vadd.f32 0.0, %v659
        %v661 = vpop.f32.mrb[0].mxu0
        %662 = vmatprep.mubr.f32.mxu0 0.0
        %663 = vmatmul.mubr.f32.gmra.mrb[0].mxu0 %v521
        %v664 = vpop.f32.mrb[0].mxu0
        %v665 = vadd.f32 0.0, %v664
        %v666 = vpop.f32.mrb[0].mxu0
        %667 = vmatprep.mubr.f32.mxu0 0.0
        %668 = vmatmul.mubr.f32.gmra.mrb[0].mxu0 %v524
        %v669 = vpop.f32.mrb[0].mxu0
        %v670 = vadd.f32 0.0, %v669
        %v671 = vpop.f32.mrb[0].mxu0
        %672 = vmatprep.mubr.f32.mxu0 0.0
        %673 = vmatmul.mubr.f32.gmra.mrb[0].mxu0 %v527
        %v674 = vpop.f32.mrb[0].mxu0
        %v675 = vadd.f32 0.0, %v674
        %v676 = vpop.f32.mrb[0].mxu0
        %677 = vdwg.mxu0
        %s678 = scalar_lea.vmem %s432, 128 [#allocation2]
        %v679 = vld [vmem:[%s678] sm:$0xff]
        %v680 = vld [vmem:[%s678 + $0x8] sm:$0xff]
        %v681 = vld [vmem:[%s678 + $0x10] sm:$0xff]
        %v682 = vld [vmem:[%s678 + $0x18] sm:$0xff]
        %v683 = vld [vmem:[%s678 + $0x20] sm:$0xff]
        %v684 = vld [vmem:[%s678 + $0x28] sm:$0xff]
        %v685 = vld [vmem:[%s678 + $0x30] sm:$0xff]
        %v686 = vld [vmem:[%s678 + $0x38] sm:$0xff]
        %v687 = vld [vmem:[%s678 + $0x40] sm:$0xff]
        %v688 = vld [vmem:[%s678 + $0x48] sm:$0xff]
        %v689 = vld [vmem:[%s678 + $0x50] sm:$0xff]
        %v690 = vld [vmem:[%s678 + $0x58] sm:$0xff]
        %v691 = vld [vmem:[%s678 + $0x60] sm:$0xff]
        %v692 = vld [vmem:[%s678 + $0x68] sm:$0xff]
        %v693 = vld [vmem:[%s678 + $0x70] sm:$0xff]
        %v694 = vld [vmem:[%s678 + $0x78] sm:$0xff]
        %v696 = vsel %vm480, %v679, 0
        %v699 = vsel %vm480, %v680, 0
        %v702 = vsel %vm480, %v681, 0
        %v705 = vsel %vm480, %v682, 0
        %v708 = vsel %vm480, %v683, 0
        %v711 = vsel %vm480, %v684, 0
        %v714 = vsel %vm480, %v685, 0
        %v717 = vsel %vm480, %v686, 0
        %v720 = vsel %vm480, %v687, 0
        %v723 = vsel %vm480, %v688, 0
        %v726 = vsel %vm480, %v689, 0
        %v729 = vsel %vm480, %v690, 0
        %v732 = vsel %vm480, %v691, 0
        %v735 = vsel %vm480, %v692, 0
        %v738 = vsel %vm480, %v693, 0
        %v741 = vsel %vm480, %v694, 0
        %743 = vmatprep.subr.mxu0 0.0
        %744 = vmatpush1.msra.mxu0 %v460
        %745 = vmatprep.subr.mxu0 0.0
        %746 = vmatpush1.msra.mxu0 %v461
        %747 = vmatprep.subr.mxu0 0.0
        %748 = vmatpush1.msra.mxu0 %v462
        %749 = vmatprep.subr.mxu0 0.0
        %750 = vmatpush1.msra.mxu0 %v531
        %751 = vmatprep.subr.mxu0 0.0
        %752 = vmatpush1.msra.mxu0 0.0
        %753 = vmatprep.subr.mxu0 0.0
        %754 = vmatpush1.msra.mxu0 0.0
        %755 = vmatprep.subr.mxu0 0.0
        %756 = vmatpush1.msra.mxu0 0.0
        %757 = vmatprep.subr.mxu0 0.0
        %758 = vmatpush1.msra.mxu0 0.0
        %759 = vmatprep.subr.mxu0 0.0
        %760 = vmatpush1.msra.mxu0 0.0
        %761 = vmatprep.subr.mxu0 0.0
        %762 = vmatpush1.msra.mxu0 0.0
        %763 = vmatprep.subr.mxu0 0.0
        %764 = vmatpush1.msra.mxu0 0.0
        %765 = vmatprep.subr.mxu0 0.0
        %766 = vmatpush1.msra.mxu0 0.0
        %767 = vmatprep.subr.mxu0 0.0
        %768 = vmatpush1.msra.mxu0 0.0
        %769 = vmatprep.subr.mxu0 0.0
        %770 = vmatpush1.msra.mxu0 0.0
        %771 = vmatprep.subr.mxu0 0.0
        %772 = vmatpush1.msra.mxu0 0.0
        %773 = vmatprep.subr.mxu0 0.0
        %774 = vmatpush1.msra.mxu0 0.0
        %775 = vmatprep.subr.mxu0 0.0
        %776 = vmatpush1.msra.mxu0 0.0
        %777 = vmatprep.subr.mxu0 0.0
        %778 = vmatpush1.msra.mxu0 0.0
        %779 = vmatprep.subr.mxu0 0.0
        %780 = vmatpush1.msra.mxu0 0.0
        %781 = vmatprep.subr.mxu0 0.0
        %782 = vmatpush1.msra.mxu0 0.0
        %783 = vmatprep.subr.mxu0 0.0
        %784 = vmatpush1.msra.mxu0 0.0
        %785 = vmatprep.subr.mxu0 0.0
        %786 = vmatpush1.msra.mxu0 0.0
        %787 = vmatprep.subr.mxu0 0.0
        %788 = vmatpush1.msra.mxu0 0.0
        %789 = vmatprep.subr.mxu0 0.0
        %790 = vmatpush1.msra.mxu0 0.0
        %791 = vmatprep.subr.mxu0 0.0
        %792 = vmatpush1.msra.mxu0 0.0
        %793 = vmatprep.subr.mxu0 0.0
        %794 = vmatpush1.msra.mxu0 0.0
        %795 = vmatprep.subr.mxu0 0.0
        %796 = vmatpush1.msra.mxu0 0.0
        %797 = vmatprep.subr.mxu0 0.0
        %798 = vmatpush1.msra.mxu0 0.0
        %799 = vmatprep.subr.mxu0 0.0
        %800 = vmatpush1.msra.mxu0 0.0
        %801 = vmatprep.subr.mxu0 0.0
        %802 = vmatpush1.msra.mxu0 0.0
        %803 = vmatprep.subr.mxu0 0.0
        %804 = vmatpush1.msra.mxu0 0.0
        %805 = vmatprep.subr.mxu0 0.0
        %806 = vmatpush1.msra.mxu0 0.0
        %807 = vmatprep.mubr.f32.mxu0 0.0
        %808 = vmatmul.mubr.f32.gmra.mrb[0].mxu0 %v696
        %v809 = vpop.f32.mrb[0].mxu0
        %v810 = vadd.f32 0.0, %v809
        %v811 = vpop.f32.mrb[0].mxu0
        %812 = vmatprep.mubr.f32.mxu0 0.0
        %813 = vmatmul.mubr.f32.gmra.mrb[0].mxu0 %v699
        %v814 = vpop.f32.mrb[0].mxu0
        %v815 = vadd.f32 0.0, %v814
        %v816 = vpop.f32.mrb[0].mxu0
        %817 = vmatprep.mubr.f32.mxu0 0.0
        %818 = vmatmul.mubr.f32.gmra.mrb[0].mxu0 %v702
        %v819 = vpop.f32.mrb[0].mxu0
        %v820 = vadd.f32 0.0, %v819
        %v821 = vpop.f32.mrb[0].mxu0
        %822 = vmatprep.mubr.f32.mxu0 0.0
        %823 = vmatmul.mubr.f32.gmra.mrb[0].mxu0 %v705
        %v824 = vpop.f32.mrb[0].mxu0
        %v825 = vadd.f32 0.0, %v824
        %v826 = vpop.f32.mrb[0].mxu0
        %827 = vmatprep.mubr.f32.mxu0 0.0
        %828 = vmatmul.mubr.f32.gmra.mrb[0].mxu0 %v708
        %v829 = vpop.f32.mrb[0].mxu0
        %v830 = vadd.f32 0.0, %v829
        %v831 = vpop.f32.mrb[0].mxu0
        %832 = vmatprep.mubr.f32.mxu0 0.0
        %833 = vmatmul.mubr.f32.gmra.mrb[0].mxu0 %v711
        %v834 = vpop.f32.mrb[0].mxu0
        %v835 = vadd.f32 0.0, %v834
        %v836 = vpop.f32.mrb[0].mxu0
        %837 = vmatprep.mubr.f32.mxu0 0.0
        %838 = vmatmul.mubr.f32.gmra.mrb[0].mxu0 %v714
        %v839 = vpop.f32.mrb[0].mxu0
        %v840 = vadd.f32 0.0, %v839
        %v841 = vpop.f32.mrb[0].mxu0
        %842 = vmatprep.mubr.f32.mxu0 0.0
        %843 = vmatmul.mubr.f32.gmra.mrb[0].mxu0 %v717
        %v844 = vpop.f32.mrb[0].mxu0
        %v845 = vadd.f32 0.0, %v844
        %v846 = vpop.f32.mrb[0].mxu0
        %847 = vmatprep.mubr.f32.mxu0 0.0
        %848 = vmatmul.mubr.f32.gmra.mrb[0].mxu0 %v720
        %v849 = vpop.f32.mrb[0].mxu0
        %v850 = vadd.f32 0.0, %v849
        %v851 = vpop.f32.mrb[0].mxu0
        %852 = vmatprep.mubr.f32.mxu0 0.0
        %853 = vmatmul.mubr.f32.gmra.mrb[0].mxu0 %v723
        %v854 = vpop.f32.mrb[0].mxu0
        %v855 = vadd.f32 0.0, %v854
        %v856 = vpop.f32.mrb[0].mxu0
        %857 = vmatprep.mubr.f32.mxu0 0.0
        %858 = vmatmul.mubr.f32.gmra.mrb[0].mxu0 %v726
        %v859 = vpop.f32.mrb[0].mxu0
        %v860 = vadd.f32 0.0, %v859
        %v861 = vpop.f32.mrb[0].mxu0
        %862 = vmatprep.mubr.f32.mxu0 0.0
        %863 = vmatmul.mubr.f32.gmra.mrb[0].mxu0 %v729
        %v864 = vpop.f32.mrb[0].mxu0
        %v865 = vadd.f32 0.0, %v864
        %v866 = vpop.f32.mrb[0].mxu0
        %867 = vmatprep.mubr.f32.mxu0 0.0
        %868 = vmatmul.mubr.f32.gmra.mrb[0].mxu0 %v732
        %v869 = vpop.f32.mrb[0].mxu0
        %v870 = vadd.f32 0.0, %v869
        %v871 = vpop.f32.mrb[0].mxu0
        %872 = vmatprep.mubr.f32.mxu0 0.0
        %873 = vmatmul.mubr.f32.gmra.mrb[0].mxu0 %v735
        %v874 = vpop.f32.mrb[0].mxu0
        %v875 = vadd.f32 0.0, %v874
        %v876 = vpop.f32.mrb[0].mxu0
        %877 = vmatprep.mubr.f32.mxu0 0.0
        %878 = vmatmul.mubr.f32.gmra.mrb[0].mxu0 %v738
        %v879 = vpop.f32.mrb[0].mxu0
        %v880 = vadd.f32 0.0, %v879
        %v881 = vpop.f32.mrb[0].mxu0
        %882 = vmatprep.mubr.f32.mxu0 0.0
        %883 = vmatmul.mubr.f32.gmra.mrb[0].mxu0 %v741
        %v884 = vpop.f32.mrb[0].mxu0
        %v885 = vadd.f32 0.0, %v884
        %v886 = vpop.f32.mrb[0].mxu0
        %887 = vdwg.mxu0
        %v888 = vmax.f32 %v600, %v810
        %v889 = vmax.f32 %v605, %v815
        %v890 = vmax.f32 %v610, %v820
        %v891 = vmax.f32 %v615, %v825
        %v892 = vmax.f32 %v620, %v830
        %v893 = vmax.f32 %v625, %v835
        %v894 = vmax.f32 %v630, %v840
        %v895 = vmax.f32 %v635, %v845
        %v896 = vmax.f32 %v640, %v850
        %v897 = vmax.f32 %v645, %v855
        %v898 = vmax.f32 %v650, %v860
        %v899 = vmax.f32 %v655, %v865
        %v900 = vmax.f32 %v660, %v870
        %v901 = vmax.f32 %v665, %v875
        %v902 = vmax.f32 %v670, %v880
        %v903 = vmax.f32 %v675, %v885
        %s904 = scalar_lea.vmem %s432, 256 [#allocation2]
        %v905 = vld [vmem:[%s904] sm:$0xff]
        %v906 = vld [vmem:[%s904 + $0x8] sm:$0xff]
        %v907 = vld [vmem:[%s904 + $0x10] sm:$0xff]
        %v908 = vld [vmem:[%s904 + $0x18] sm:$0xff]
        %v909 = vld [vmem:[%s904 + $0x20] sm:$0xff]
        %v910 = vld [vmem:[%s904 + $0x28] sm:$0xff]
        %v911 = vld [vmem:[%s904 + $0x30] sm:$0xff]
        %v912 = vld [vmem:[%s904 + $0x38] sm:$0xff]
        %v913 = vld [vmem:[%s904 + $0x40] sm:$0xff]
        %v914 = vld [vmem:[%s904 + $0x48] sm:$0xff]
        %v915 = vld [vmem:[%s904 + $0x50] sm:$0xff]
        %v916 = vld [vmem:[%s904 + $0x58] sm:$0xff]
        %v917 = vld [vmem:[%s904 + $0x60] sm:$0xff]
        %v918 = vld [vmem:[%s904 + $0x68] sm:$0xff]
        %v919 = vld [vmem:[%s904 + $0x70] sm:$0xff]
        %v920 = vld [vmem:[%s904 + $0x78] sm:$0xff]
        %v922 = vsel %vm480, %v905, 0
        %v925 = vsel %vm480, %v906, 0
        %v928 = vsel %vm480, %v907, 0
        %v931 = vsel %vm480, %v908, 0
        %v934 = vsel %vm480, %v909, 0
        %v937 = vsel %vm480, %v910, 0
        %v940 = vsel %vm480, %v911, 0
        %v943 = vsel %vm480, %v912, 0
        %v946 = vsel %vm480, %v913, 0
        %v949 = vsel %vm480, %v914, 0
        %v952 = vsel %vm480, %v915, 0
        %v955 = vsel %vm480, %v916, 0
        %v958 = vsel %vm480, %v917, 0
        %v961 = vsel %vm480, %v918, 0
        %v964 = vsel %vm480, %v919, 0
        %v967 = vsel %vm480, %v920, 0
        %969 = vmatprep.subr.mxu0 0.0
        %970 = vmatpush1.msra.mxu0 %v460
        %971 = vmatprep.subr.mxu0 0.0
        %972 = vmatpush1.msra.mxu0 %v461
        %973 = vmatprep.subr.mxu0 0.0
        %974 = vmatpush1.msra.mxu0 %v462
        %975 = vmatprep.subr.mxu0 0.0
        %976 = vmatpush1.msra.mxu0 %v531
        %977 = vmatprep.subr.mxu0 0.0
        %978 = vmatpush1.msra.mxu0 0.0
        %979 = vmatprep.subr.mxu0 0.0
        %980 = vmatpush1.msra.mxu0 0.0
        %981 = vmatprep.subr.mxu0 0.0
        %982 = vmatpush1.msra.mxu0 0.0
        %983 = vmatprep.subr.mxu0 0.0
        %984 = vmatpush1.msra.mxu0 0.0
        %985 = vmatprep.subr.mxu0 0.0
        %986 = vmatpush1.msra.mxu0 0.0
        %987 = vmatprep.subr.mxu0 0.0
        %988 = vmatpush1.msra.mxu0 0.0
        %989 = vmatprep.subr.mxu0 0.0
        %990 = vmatpush1.msra.mxu0 0.0
        %991 = vmatprep.subr.mxu0 0.0
        %992 = vmatpush1.msra.mxu0 0.0
        %993 = vmatprep.subr.mxu0 0.0
        %994 = vmatpush1.msra.mxu0 0.0
        %995 = vmatprep.subr.mxu0 0.0
        %996 = vmatpush1.msra.mxu0 0.0
        %997 = vmatprep.subr.mxu0 0.0
        %998 = vmatpush1.msra.mxu0 0.0
        %999 = vmatprep.subr.mxu0 0.0
        %1000 = vmatpush1.msra.mxu0 0.0
        %1001 = vmatprep.subr.mxu0 0.0
        %1002 = vmatpush1.msra.mxu0 0.0
        %1003 = vmatprep.subr.mxu0 0.0
        %1004 = vmatpush1.msra.mxu0 0.0
        %1005 = vmatprep.subr.mxu0 0.0
        %1006 = vmatpush1.msra.mxu0 0.0
        %1007 = vmatprep.subr.mxu0 0.0
        %1008 = vmatpush1.msra.mxu0 0.0
        %1009 = vmatprep.subr.mxu0 0.0
        %1010 = vmatpush1.msra.mxu0 0.0
        %1011 = vmatprep.subr.mxu0 0.0
        %1012 = vmatpush1.msra.mxu0 0.0
        %1013 = vmatprep.subr.mxu0 0.0
        %1014 = vmatpush1.msra.mxu0 0.0
        %1015 = vmatprep.subr.mxu0 0.0
        %1016 = vmatpush1.msra.mxu0 0.0
        %1017 = vmatprep.subr.mxu0 0.0
        %1018 = vmatpush1.msra.mxu0 0.0
        %1019 = vmatprep.subr.mxu0 0.0
        %1020 = vmatpush1.msra.mxu0 0.0
        %1021 = vmatprep.subr.mxu0 0.0
        %1022 = vmatpush1.msra.mxu0 0.0
        %1023 = vmatprep.subr.mxu0 0.0
        %1024 = vmatpush1.msra.mxu0 0.0
        %1025 = vmatprep.subr.mxu0 0.0
        %1026 = vmatpush1.msra.mxu0 0.0
        %1027 = vmatprep.subr.mxu0 0.0
        %1028 = vmatpush1.msra.mxu0 0.0
        %1029 = vmatprep.subr.mxu0 0.0
        %1030 = vmatpush1.msra.mxu0 0.0
        %1031 = vmatprep.subr.mxu0 0.0
        %1032 = vmatpush1.msra.mxu0 0.0
        %1033 = vmatprep.mubr.f32.mxu0 0.0
        %1034 = vmatmul.mubr.f32.gmra.mrb[0].mxu0 %v922
        %v1035 = vpop.f32.mrb[0].mxu0
        %v1036 = vadd.f32 0.0, %v1035
        %v1037 = vpop.f32.mrb[0].mxu0
        %1038 = vmatprep.mubr.f32.mxu0 0.0
        %1039 = vmatmul.mubr.f32.gmra.mrb[0].mxu0 %v925
        %v1040 = vpop.f32.mrb[0].mxu0
        %v1041 = vadd.f32 0.0, %v1040
        %v1042 = vpop.f32.mrb[0].mxu0
        %1043 = vmatprep.mubr.f32.mxu0 0.0
        %1044 = vmatmul.mubr.f32.gmra.mrb[0].mxu0 %v928
        %v1045 = vpop.f32.mrb[0].mxu0
        %v1046 = vadd.f32 0.0, %v1045
        %v1047 = vpop.f32.mrb[0].mxu0
        %1048 = vmatprep.mubr.f32.mxu0 0.0
        %1049 = vmatmul.mubr.f32.gmra.mrb[0].mxu0 %v931
        %v1050 = vpop.f32.mrb[0].mxu0
        %v1051 = vadd.f32 0.0, %v1050
        %v1052 = vpop.f32.mrb[0].mxu0
        %1053 = vmatprep.mubr.f32.mxu0 0.0
        %1054 = vmatmul.mubr.f32.gmra.mrb[0].mxu0 %v934
        %v1055 = vpop.f32.mrb[0].mxu0
        %v1056 = vadd.f32 0.0, %v1055
        %v1057 = vpop.f32.mrb[0].mxu0
        %1058 = vmatprep.mubr.f32.mxu0 0.0
        %1059 = vmatmul.mubr.f32.gmra.mrb[0].mxu0 %v937
        %v1060 = vpop.f32.mrb[0].mxu0
        %v1061 = vadd.f32 0.0, %v1060
        %v1062 = vpop.f32.mrb[0].mxu0
        %1063 = vmatprep.mubr.f32.mxu0 0.0
        %1064 = vmatmul.mubr.f32.gmra.mrb[0].mxu0 %v940
        %v1065 = vpop.f32.mrb[0].mxu0
        %v1066 = vadd.f32 0.0, %v1065
        %v1067 = vpop.f32.mrb[0].mxu0
        %1068 = vmatprep.mubr.f32.mxu0 0.0
        %1069 = vmatmul.mubr.f32.gmra.mrb[0].mxu0 %v943
        %v1070 = vpop.f32.mrb[0].mxu0
        %v1071 = vadd.f32 0.0, %v1070
        %v1072 = vpop.f32.mrb[0].mxu0
        %1073 = vmatprep.mubr.f32.mxu0 0.0
        %1074 = vmatmul.mubr.f32.gmra.mrb[0].mxu0 %v946
        %v1075 = vpop.f32.mrb[0].mxu0
        %v1076 = vadd.f32 0.0, %v1075
        %v1077 = vpop.f32.mrb[0].mxu0
        %1078 = vmatprep.mubr.f32.mxu0 0.0
        %1079 = vmatmul.mubr.f32.gmra.mrb[0].mxu0 %v949
        %v1080 = vpop.f32.mrb[0].mxu0
        %v1081 = vadd.f32 0.0, %v1080
        %v1082 = vpop.f32.mrb[0].mxu0
        %1083 = vmatprep.mubr.f32.mxu0 0.0
        %1084 = vmatmul.mubr.f32.gmra.mrb[0].mxu0 %v952
        %v1085 = vpop.f32.mrb[0].mxu0
        %v1086 = vadd.f32 0.0, %v1085
        %v1087 = vpop.f32.mrb[0].mxu0
        %1088 = vmatprep.mubr.f32.mxu0 0.0
        %1089 = vmatmul.mubr.f32.gmra.mrb[0].mxu0 %v955
        %v1090 = vpop.f32.mrb[0].mxu0
        %v1091 = vadd.f32 0.0, %v1090
        %v1092 = vpop.f32.mrb[0].mxu0
        %1093 = vmatprep.mubr.f32.mxu0 0.0
        %1094 = vmatmul.mubr.f32.gmra.mrb[0].mxu0 %v958
        %v1095 = vpop.f32.mrb[0].mxu0
        %v1096 = vadd.f32 0.0, %v1095
        %v1097 = vpop.f32.mrb[0].mxu0
        %1098 = vmatprep.mubr.f32.mxu0 0.0
        %1099 = vmatmul.mubr.f32.gmra.mrb[0].mxu0 %v961
        %v1100 = vpop.f32.mrb[0].mxu0
        %v1101 = vadd.f32 0.0, %v1100
        %v1102 = vpop.f32.mrb[0].mxu0
        %1103 = vmatprep.mubr.f32.mxu0 0.0
        %1104 = vmatmul.mubr.f32.gmra.mrb[0].mxu0 %v964
        %v1105 = vpop.f32.mrb[0].mxu0
        %v1106 = vadd.f32 0.0, %v1105
        %v1107 = vpop.f32.mrb[0].mxu0
        %1108 = vmatprep.mubr.f32.mxu0 0.0
        %1109 = vmatmul.mubr.f32.gmra.mrb[0].mxu0 %v967
        %v1110 = vpop.f32.mrb[0].mxu0
        %v1111 = vadd.f32 0.0, %v1110
        %v1112 = vpop.f32.mrb[0].mxu0
        %1113 = vdwg.mxu0
        %v1114 = vmax.f32 %v888, %v1036
        %v1115 = vmax.f32 %v889, %v1041
        %v1116 = vmax.f32 %v890, %v1046
        %v1117 = vmax.f32 %v891, %v1051
        %v1118 = vmax.f32 %v892, %v1056
        %v1119 = vmax.f32 %v893, %v1061
        %v1120 = vmax.f32 %v894, %v1066
        %v1121 = vmax.f32 %v895, %v1071
        %v1122 = vmax.f32 %v896, %v1076
        %v1123 = vmax.f32 %v897, %v1081
        %v1124 = vmax.f32 %v898, %v1086
        %v1125 = vmax.f32 %v899, %v1091
        %v1126 = vmax.f32 %v900, %v1096
        %v1127 = vmax.f32 %v901, %v1101
        %v1128 = vmax.f32 %v902, %v1106
        %v1129 = vmax.f32 %v903, %v1111
        %s1130 = scalar_lea.vmem %s432, 384 [#allocation2]
        %v1131 = vld [vmem:[%s1130] sm:$0xff]
        %v1132 = vld [vmem:[%s1130 + $0x8] sm:$0xff]
        %v1133 = vld [vmem:[%s1130 + $0x10] sm:$0xff]
        %v1134 = vld [vmem:[%s1130 + $0x18] sm:$0xff]
        %v1135 = vld [vmem:[%s1130 + $0x20] sm:$0xff]
        %v1136 = vld [vmem:[%s1130 + $0x28] sm:$0xff]
        %v1137 = vld [vmem:[%s1130 + $0x30] sm:$0xff]
        %v1138 = vld [vmem:[%s1130 + $0x38] sm:$0xff]
        %v1139 = vld [vmem:[%s1130 + $0x40] sm:$0xff]
        %v1140 = vld [vmem:[%s1130 + $0x48] sm:$0xff]
        %v1141 = vld [vmem:[%s1130 + $0x50] sm:$0xff]
        %v1142 = vld [vmem:[%s1130 + $0x58] sm:$0xff]
        %v1143 = vld [vmem:[%s1130 + $0x60] sm:$0xff]
        %v1144 = vld [vmem:[%s1130 + $0x68] sm:$0xff]
        %v1145 = vld [vmem:[%s1130 + $0x70] sm:$0xff]
        %v1146 = vld [vmem:[%s1130 + $0x78] sm:$0xff]
        %v1148 = vsel %vm480, %v1131, 0
        %v1151 = vsel %vm480, %v1132, 0
        %v1154 = vsel %vm480, %v1133, 0
        %v1157 = vsel %vm480, %v1134, 0
        %v1160 = vsel %vm480, %v1135, 0
        %v1163 = vsel %vm480, %v1136, 0
        %v1166 = vsel %vm480, %v1137, 0
        %v1169 = vsel %vm480, %v1138, 0
        %v1172 = vsel %vm480, %v1139, 0
        %v1175 = vsel %vm480, %v1140, 0
        %v1178 = vsel %vm480, %v1141, 0
        %v1181 = vsel %vm480, %v1142, 0
        %v1184 = vsel %vm480, %v1143, 0
        %v1187 = vsel %vm480, %v1144, 0
        %v1190 = vsel %vm480, %v1145, 0
        %v1193 = vsel %vm480, %v1146, 0
        %1195 = vmatprep.subr.mxu0 0.0
        %1196 = vmatpush1.msra.mxu0 %v460
        %1197 = vmatprep.subr.mxu0 0.0
        %1198 = vmatpush1.msra.mxu0 %v461
        %1199 = vmatprep.subr.mxu0 0.0
        %1200 = vmatpush1.msra.mxu0 %v462
        %1201 = vmatprep.subr.mxu0 0.0
        %1202 = vmatpush1.msra.mxu0 %v531
        %1203 = vmatprep.subr.mxu0 0.0
        %1204 = vmatpush1.msra.mxu0 0.0
        %1205 = vmatprep.subr.mxu0 0.0
        %1206 = vmatpush1.msra.mxu0 0.0
        %1207 = vmatprep.subr.mxu0 0.0
        %1208 = vmatpush1.msra.mxu0 0.0
        %1209 = vmatprep.subr.mxu0 0.0
        %1210 = vmatpush1.msra.mxu0 0.0
        %1211 = vmatprep.subr.mxu0 0.0
        %1212 = vmatpush1.msra.mxu0 0.0
        %1213 = vmatprep.subr.mxu0 0.0
        %1214 = vmatpush1.msra.mxu0 0.0
        %1215 = vmatprep.subr.mxu0 0.0
        %1216 = vmatpush1.msra.mxu0 0.0
        %1217 = vmatprep.subr.mxu0 0.0
        %1218 = vmatpush1.msra.mxu0 0.0
        %1219 = vmatprep.subr.mxu0 0.0
        %1220 = vmatpush1.msra.mxu0 0.0
        %1221 = vmatprep.subr.mxu0 0.0
        %1222 = vmatpush1.msra.mxu0 0.0
        %1223 = vmatprep.subr.mxu0 0.0
        %1224 = vmatpush1.msra.mxu0 0.0
        %1225 = vmatprep.subr.mxu0 0.0
        %1226 = vmatpush1.msra.mxu0 0.0
        %1227 = vmatprep.subr.mxu0 0.0
        %1228 = vmatpush1.msra.mxu0 0.0
        %1229 = vmatprep.subr.mxu0 0.0
        %1230 = vmatpush1.msra.mxu0 0.0
        %1231 = vmatprep.subr.mxu0 0.0
        %1232 = vmatpush1.msra.mxu0 0.0
        %1233 = vmatprep.subr.mxu0 0.0
        %1234 = vmatpush1.msra.mxu0 0.0
        %1235 = vmatprep.subr.mxu0 0.0
        %1236 = vmatpush1.msra.mxu0 0.0
        %1237 = vmatprep.subr.mxu0 0.0
        %1238 = vmatpush1.msra.mxu0 0.0
        %1239 = vmatprep.subr.mxu0 0.0
        %1240 = vmatpush1.msra.mxu0 0.0
        %1241 = vmatprep.subr.mxu0 0.0
        %1242 = vmatpush1.msra.mxu0 0.0
        %1243 = vmatprep.subr.mxu0 0.0
        %1244 = vmatpush1.msra.mxu0 0.0
        %1245 = vmatprep.subr.mxu0 0.0
        %1246 = vmatpush1.msra.mxu0 0.0
        %1247 = vmatprep.subr.mxu0 0.0
        %1248 = vmatpush1.msra.mxu0 0.0
        %1249 = vmatprep.subr.mxu0 0.0
        %1250 = vmatpush1.msra.mxu0 0.0
        %1251 = vmatprep.subr.mxu0 0.0
        %1252 = vmatpush1.msra.mxu0 0.0
        %1253 = vmatprep.subr.mxu0 0.0
        %1254 = vmatpush1.msra.mxu0 0.0
        %1255 = vmatprep.subr.mxu0 0.0
        %1256 = vmatpush1.msra.mxu0 0.0
        %1257 = vmatprep.subr.mxu0 0.0
        %1258 = vmatpush1.msra.mxu0 0.0
        %1259 = vmatprep.mubr.f32.mxu0 0.0
        %1260 = vmatmul.mubr.f32.gmra.mrb[0].mxu0 %v1148
        %v1261 = vpop.f32.mrb[0].mxu0
        %v1262 = vadd.f32 0.0, %v1261
        %v1263 = vpop.f32.mrb[0].mxu0
        %1264 = vmatprep.mubr.f32.mxu0 0.0
        %1265 = vmatmul.mubr.f32.gmra.mrb[0].mxu0 %v1151
        %v1266 = vpop.f32.mrb[0].mxu0
        %v1267 = vadd.f32 0.0, %v1266
        %v1268 = vpop.f32.mrb[0].mxu0
        %1269 = vmatprep.mubr.f32.mxu0 0.0
        %1270 = vmatmul.mubr.f32.gmra.mrb[0].mxu0 %v1154
        %v1271 = vpop.f32.mrb[0].mxu0
        %v1272 = vadd.f32 0.0, %v1271
        %v1273 = vpop.f32.mrb[0].mxu0
        %1274 = vmatprep.mubr.f32.mxu0 0.0
        %1275 = vmatmul.mubr.f32.gmra.mrb[0].mxu0 %v1157
        %v1276 = vpop.f32.mrb[0].mxu0
        %v1277 = vadd.f32 0.0, %v1276
        %v1278 = vpop.f32.mrb[0].mxu0
        %1279 = vmatprep.mubr.f32.mxu0 0.0
        %1280 = vmatmul.mubr.f32.gmra.mrb[0].mxu0 %v1160
        %v1281 = vpop.f32.mrb[0].mxu0
        %v1282 = vadd.f32 0.0, %v1281
        %v1283 = vpop.f32.mrb[0].mxu0
        %1284 = vmatprep.mubr.f32.mxu0 0.0
        %1285 = vmatmul.mubr.f32.gmra.mrb[0].mxu0 %v1163
        %v1286 = vpop.f32.mrb[0].mxu0
        %v1287 = vadd.f32 0.0, %v1286
        %v1288 = vpop.f32.mrb[0].mxu0
        %1289 = vmatprep.mubr.f32.mxu0 0.0
        %1290 = vmatmul.mubr.f32.gmra.mrb[0].mxu0 %v1166
        %v1291 = vpop.f32.mrb[0].mxu0
        %v1292 = vadd.f32 0.0, %v1291
        %v1293 = vpop.f32.mrb[0].mxu0
        %1294 = vmatprep.mubr.f32.mxu0 0.0
        %1295 = vmatmul.mubr.f32.gmra.mrb[0].mxu0 %v1169
        %v1296 = vpop.f32.mrb[0].mxu0
        %v1297 = vadd.f32 0.0, %v1296
        %v1298 = vpop.f32.mrb[0].mxu0
        %1299 = vmatprep.mubr.f32.mxu0 0.0
        %1300 = vmatmul.mubr.f32.gmra.mrb[0].mxu0 %v1172
        %v1301 = vpop.f32.mrb[0].mxu0
        %v1302 = vadd.f32 0.0, %v1301
        %v1303 = vpop.f32.mrb[0].mxu0
        %1304 = vmatprep.mubr.f32.mxu0 0.0
        %1305 = vmatmul.mubr.f32.gmra.mrb[0].mxu0 %v1175
        %v1306 = vpop.f32.mrb[0].mxu0
        %v1307 = vadd.f32 0.0, %v1306
        %v1308 = vpop.f32.mrb[0].mxu0
        %1309 = vmatprep.mubr.f32.mxu0 0.0
        %1310 = vmatmul.mubr.f32.gmra.mrb[0].mxu0 %v1178
        %v1311 = vpop.f32.mrb[0].mxu0
        %v1312 = vadd.f32 0.0, %v1311
        %v1313 = vpop.f32.mrb[0].mxu0
        %1314 = vmatprep.mubr.f32.mxu0 0.0
        %1315 = vmatmul.mubr.f32.gmra.mrb[0].mxu0 %v1181
        %v1316 = vpop.f32.mrb[0].mxu0
        %v1317 = vadd.f32 0.0, %v1316
        %v1318 = vpop.f32.mrb[0].mxu0
        %1319 = vmatprep.mubr.f32.mxu0 0.0
        %1320 = vmatmul.mubr.f32.gmra.mrb[0].mxu0 %v1184
        %v1321 = vpop.f32.mrb[0].mxu0
        %v1322 = vadd.f32 0.0, %v1321
        %v1323 = vpop.f32.mrb[0].mxu0
        %1324 = vmatprep.mubr.f32.mxu0 0.0
        %1325 = vmatmul.mubr.f32.gmra.mrb[0].mxu0 %v1187
        %v1326 = vpop.f32.mrb[0].mxu0
        %v1327 = vadd.f32 0.0, %v1326
        %v1328 = vpop.f32.mrb[0].mxu0
        %1329 = vmatprep.mubr.f32.mxu0 0.0
        %1330 = vmatmul.mubr.f32.gmra.mrb[0].mxu0 %v1190
        %v1331 = vpop.f32.mrb[0].mxu0
        %v1332 = vadd.f32 0.0, %v1331
        %v1333 = vpop.f32.mrb[0].mxu0
        %1334 = vmatprep.mubr.f32.mxu0 0.0
        %1335 = vmatmul.mubr.f32.gmra.mrb[0].mxu0 %v1193
        %v1336 = vpop.f32.mrb[0].mxu0
        %v1337 = vadd.f32 0.0, %v1336
        %v1338 = vpop.f32.mrb[0].mxu0
        %1339 = vdwg.mxu0
        %v1340 = vmax.f32 %v1114, %v1262
        %v1341 = vmax.f32 %v1115, %v1267
        %v1342 = vmax.f32 %v1116, %v1272
        %v1343 = vmax.f32 %v1117, %v1277
        %v1344 = vmax.f32 %v1118, %v1282
        %v1345 = vmax.f32 %v1119, %v1287
        %v1346 = vmax.f32 %v1120, %v1292
        %v1347 = vmax.f32 %v1121, %v1297
        %v1348 = vmax.f32 %v1122, %v1302
        %v1349 = vmax.f32 %v1123, %v1307
        %v1350 = vmax.f32 %v1124, %v1312
        %v1351 = vmax.f32 %v1125, %v1317
        %v1352 = vmax.f32 %v1126, %v1322
        %v1353 = vmax.f32 %v1127, %v1327
        %v1354 = vmax.f32 %v1128, %v1332
        %v1355 = vmax.f32 %v1129, %v1337
        %v1356 = vld [vmem:[%s2] sm:$0x1]
        %v1358 = vlaneseq
        %v1359 = vshrl.u32 %v1358, 7
        %v1360 = vsub.s32 0, %v1359
        %v1361 = vrot.slane %v1356, %v1360
        %v1363 = vadd.f32 %v1340, %v1361
        %v1364 = vadd.f32 %v1341, %v1361
        %v1365 = vadd.f32 %v1342, %v1361
        %v1366 = vadd.f32 %v1343, %v1361
        %v1367 = vadd.f32 %v1344, %v1361
        %v1368 = vadd.f32 %v1345, %v1361
        %v1369 = vadd.f32 %v1346, %v1361
        %v1370 = vadd.f32 %v1347, %v1361
        %v1371 = vadd.f32 %v1348, %v1361
        %v1372 = vadd.f32 %v1349, %v1361
        %v1373 = vadd.f32 %v1350, %v1361
        %v1374 = vadd.f32 %v1351, %v1361
        %v1375 = vadd.f32 %v1352, %v1361
        %v1376 = vadd.f32 %v1353, %v1361
        %v1377 = vadd.f32 %v1354, %v1361
        %v1378 = vadd.f32 %v1355, %v1361
        %v1379 = vmax.f32 %v1363, 0.0
        %v1380 = vmax.f32 %v1364, 0.0
        %v1381 = vmax.f32 %v1365, 0.0
        %v1382 = vmax.f32 %v1366, 0.0
        %v1383 = vmax.f32 %v1367, 0.0
        %v1384 = vmax.f32 %v1368, 0.0
        %v1385 = vmax.f32 %v1369, 0.0
        %v1386 = vmax.f32 %v1370, 0.0
        %v1387 = vmax.f32 %v1371, 0.0
        %v1388 = vmax.f32 %v1372, 0.0
        %v1389 = vmax.f32 %v1373, 0.0
        %v1390 = vmax.f32 %v1374, 0.0
        %v1391 = vmax.f32 %v1375, 0.0
        %v1392 = vmax.f32 %v1376, 0.0
        %v1393 = vmax.f32 %v1377, 0.0
        %v1394 = vmax.f32 %v1378, 0.0
        %1395 = vst [vmem:[%s458] sm:$0xff] %v1379
        %1396 = vst [vmem:[%s458 + $0x8] sm:$0xff] %v1380
        %1397 = vst [vmem:[%s458 + $0x10] sm:$0xff] %v1381
        %1398 = vst [vmem:[%s458 + $0x18] sm:$0xff] %v1382
        %1399 = vst [vmem:[%s458 + $0x20] sm:$0xff] %v1383
        %1400 = vst [vmem:[%s458 + $0x28] sm:$0xff] %v1384
        %1401 = vst [vmem:[%s458 + $0x30] sm:$0xff] %v1385
        %1402 = vst [vmem:[%s458 + $0x38] sm:$0xff] %v1386
        %1403 = vst [vmem:[%s458 + $0x40] sm:$0xff] %v1387
        %1404 = vst [vmem:[%s458 + $0x48] sm:$0xff] %v1388
        %1405 = vst [vmem:[%s458 + $0x50] sm:$0xff] %v1389
        %1406 = vst [vmem:[%s458 + $0x58] sm:$0xff] %v1390
        %1407 = vst [vmem:[%s458 + $0x60] sm:$0xff] %v1391
        %1408 = vst [vmem:[%s458 + $0x68] sm:$0xff] %v1392
        %1409 = vst [vmem:[%s458 + $0x70] sm:$0xff] %v1393
        %1410 = vst [vmem:[%s458 + $0x78] sm:$0xff] %v1394
        %s1411 = smul.u32 16, %s14
        %p1412 = scmp.lt.s32.totalorder %s1411, 63
        %s1413 = scalar_select %p1412, %s1411, 63
        %s1414 = smul.addr %s1413, 8
        %s1415 = scalar_lea.vmem %s3, %s1414
        // Predicated region
        $region71: #{lenet5_forward.3} parent=65 // pred_check
          %p1416 = pneg %p100
        $region72: #{lenet5_forward.3} parent=65 // pred_check_branch
          %1418 = sbr.rel (%p1416) target = $region74
        $region73: #{lenet5_forward.3} parent=65 // pred_region
          %s1419 = smul.u32 16, %s14
        $region74: #{lenet5_forward.3} parent=65 // pred_fallthru
          _
      $region66: #{lenet5_forward.3} parent=5 // pred_fallthru
        _
      %p1420 = scmp.le.s32.totalorder 2, %s9
      // Predicated region
      $region75: #{lenet5_forward.3} parent=5 // pred_check
        %p1421 = pneg %p1420
      $region76: #{lenet5_forward.3} parent=5 // pred_check_branch
        %1423 = sbr.rel (%p1421) target = $region78
      $region77: #{lenet5_forward.3} parent=5 // pred_region
        %s1424 = ssub.s32 %s9, 2
        // Predicated region
        $region79: #{lenet5_forward.3} parent=77 // pred_check
          %p1425 = pneg %p106
        $region80: #{lenet5_forward.3} parent=77 // pred_check_branch
          %1427 = sbr.rel (%p1425) target = $region82
        $region81: #{lenet5_forward.3} parent=77 // pred_region
          %s1428 = smul.u32 16, %s15
          %p1429 = scmp.lt.s32.totalorder %s1428, 63
          %s1430 = scalar_select %p1429, %s1428, 63
          %s1431 = smul.addr %s1430, 8
          %s1432 = scalar_lea.vmem %s3, %s1431
        $region82: #{lenet5_forward.3} parent=77 // pred_fallthru
          _
      $region78: #{lenet5_forward.3} parent=5 // pred_fallthru
        _
    $region6: #{lenet5_forward.3} parent=1 // loop_footer
      %s13 = sadd.s32 1, %s9
    $region7: #{lenet5_forward.3} parent=1 // loop_footer_branch
      %8 = sbr.rel target = $region3
    $region8: #{lenet5_forward.3} parent=1 // loop_exit
      _

// kernel: lenet5_forward.5
$region0: #{lenet5_forward.5}
  #allocation0 [shape = 'u32[]', space=smem, size = 0x4, offset = 0x4, fixed_abs, tag = 'smem constant byte address 0x4 - core index']
  #allocation1 [shape = 'u32[144,128]{1,0:T(1,128)}', space=vmem, size = 0x12000, scoped, tag = 'internal scratch']
  %s0 = inlined_call_operand.vmem [shape: f32[2,400], index: 0, kind: input, shape index: {}]
  %s1 = inlined_call_operand.vmem [shape: f32[400,128], index: 1, kind: input, shape index: {}]
  %s2 = inlined_call_operand.vmem [shape: f32[1,128], index: 2, kind: input, shape index: {}]
  %s3 = inlined_call_operand.vmem [shape: f32[128,128], index: 3, kind: input, shape index: {}]
  %s4 = inlined_call_operand.vmem [shape: f32[1,128], index: 4, kind: input, shape index: {}]
  %s5 = inlined_call_operand.vmem [shape: f32[128,128], index: 5, kind: input, shape index: {}]
  %s6 = inlined_call_operand.vmem [shape: f32[1,128], index: 6, kind: input, shape index: {}]
  %s7 = inlined_call_operand.hbm [shape: f32[2,128], index: 7, kind: output, shape index: {}]
  %s8 = sld [smem:[#allocation0]]
  $region38: #{lenet5_forward.5} parent=0
    _
  %s10 = ssub.s32 1, %s8
  %s11 = scalar_select 0, %s10, %s8
  $region1: #{lenet5_forward.5} parent=0
    #allocation2 [shape = 'u8[1024]{0}', space=vmem, size = 0x400, scoped, tag = 'output window, operand 0, single buffered']
    #allocation3 [shape = 's32[1]{0}', space=sflag, size = 0x4, scoped, tag = 'scoped memory for lenet5_forward.5']
    %12 = vsyncpa [#allocation3], 0
    // Predicated region
    $region2: #{lenet5_forward.5} parent=1 // pred_check
      _
    $region3: #{lenet5_forward.5} parent=1 // pred_check_branch
      %14 = sbr.rel (0) target = $region5
    $region4: #{lenet5_forward.5} parent=1 // pred_region
      _
    $region5: #{lenet5_forward.5} parent=1 // pred_fallthru
      _
    // Predicated region
    $region6: #{lenet5_forward.5} parent=1 // pred_check
      _
    $region7: #{lenet5_forward.5} parent=1 // pred_check_branch
      %16 = sbr.rel (0) target = $region9
    $region8: #{lenet5_forward.5} parent=1 // pred_region
      _
    $region9: #{lenet5_forward.5} parent=1 // pred_fallthru
      _
    // Predicated region
    $region10: #{lenet5_forward.5} parent=1 // pred_check
      _
    $region11: #{lenet5_forward.5} parent=1 // pred_check_branch
      %18 = sbr.rel (0) target = $region13
    $region12: #{lenet5_forward.5} parent=1 // pred_region
      _
    $region13: #{lenet5_forward.5} parent=1 // pred_fallthru
      _
    // Predicated region
    $region14: #{lenet5_forward.5} parent=1 // pred_check
      _
    $region15: #{lenet5_forward.5} parent=1 // pred_check_branch
      %20 = sbr.rel (0) target = $region17
    $region16: #{lenet5_forward.5} parent=1 // pred_region
      _
    $region17: #{lenet5_forward.5} parent=1 // pred_fallthru
      _
    // Predicated region
    $region18: #{lenet5_forward.5} parent=1 // pred_check
      _
    $region19: #{lenet5_forward.5} parent=1 // pred_check_branch
      %22 = sbr.rel (0) target = $region21
    $region20: #{lenet5_forward.5} parent=1 // pred_region
      _
    $region21: #{lenet5_forward.5} parent=1 // pred_fallthru
      _
    // Predicated region
    $region22: #{lenet5_forward.5} parent=1 // pred_check
      _
    $region23: #{lenet5_forward.5} parent=1 // pred_check_branch
      %24 = sbr.rel (0) target = $region25
    $region24: #{lenet5_forward.5} parent=1 // pred_region
      _
    $region25: #{lenet5_forward.5} parent=1 // pred_fallthru
      _
    // Predicated region
    $region26: #{lenet5_forward.5} parent=1 // pred_check
      _
    $region27: #{lenet5_forward.5} parent=1 // pred_check_branch
      %26 = sbr.rel (0) target = $region29
    $region28: #{lenet5_forward.5} parent=1 // pred_region
      _
    $region29: #{lenet5_forward.5} parent=1 // pred_fallthru
      _
    %v27 = vld [vmem:[%s0] sm:$0xff]
    %v28 = vld [vmem:[%s1] sm:$0xff]
    %v29 = vld [vmem:[%s1 + $0x8] sm:$0xff]
    %v30 = vld [vmem:[%s1 + $0x10] sm:$0xff]
    %v31 = vld [vmem:[%s1 + $0x18] sm:$0xff]
    %v32 = vld [vmem:[%s1 + $0x20] sm:$0xff]
    %v33 = vld [vmem:[%s1 + $0x28] sm:$0xff]
    %v34 = vld [vmem:[%s1 + $0x30] sm:$0xff]
    %v35 = vld [vmem:[%s1 + $0x38] sm:$0xff]
    %v36 = vld [vmem:[%s1 + $0x40] sm:$0xff]
    %v37 = vld [vmem:[%s1 + $0x48] sm:$0xff]
    %v38 = vld [vmem:[%s1 + $0x50] sm:$0xff]
    %v39 = vld [vmem:[%s1 + $0x58] sm:$0xff]
    %v40 = vld [vmem:[%s1 + $0x60] sm:$0xff]
    %v41 = vld [vmem:[%s1 + $0x68] sm:$0xff]
    %v42 = vld [vmem:[%s1 + $0x70] sm:$0xff]
    %v43 = vld [vmem:[%s1 + $0x78] sm:$0xff]
    %v44 = vld [vmem:[%s1 + $0x80] sm:$0xff]
    %v45 = vld [vmem:[%s1 + $0x88] sm:$0xff]
    %v46 = vld [vmem:[%s1 + $0x90] sm:$0xff]
    %v47 = vld [vmem:[%s1 + $0x98] sm:$0xff]
    %v48 = vld [vmem:[%s1 + $0xa0] sm:$0xff]
    %v49 = vld [vmem:[%s1 + $0xa8] sm:$0xff]
    %v50 = vld [vmem:[%s1 + $0xb0] sm:$0xff]
    %v51 = vld [vmem:[%s1 + $0xb8] sm:$0xff]
    %v52 = vld [vmem:[%s1 + $0xc0] sm:$0xff]
    %v53 = vld [vmem:[%s1 + $0xc8] sm:$0xff]
    %v54 = vld [vmem:[%s1 + $0xd0] sm:$0xff]
    %v55 = vld [vmem:[%s1 + $0xd8] sm:$0xff]
    %v56 = vld [vmem:[%s1 + $0xe0] sm:$0xff]
    %v57 = vld [vmem:[%s1 + $0xe8] sm:$0xff]
    %v58 = vld [vmem:[%s1 + $0xf0] sm:$0xff]
    %v59 = vld [vmem:[%s1 + $0xf8] sm:$0xff]
    %v60 = vld [vmem:[%s1 + $0x100] sm:$0xff]
    %v61 = vld [vmem:[%s1 + $0x108] sm:$0xff]
    %v62 = vld [vmem:[%s1 + $0x110] sm:$0xff]
    %v63 = vld [vmem:[%s1 + $0x118] sm:$0xff]
    %v64 = vld [vmem:[%s1 + $0x120] sm:$0xff]
    %v65 = vld [vmem:[%s1 + $0x128] sm:$0xff]
    %v66 = vld [vmem:[%s1 + $0x130] sm:$0xff]
    %v67 = vld [vmem:[%s1 + $0x138] sm:$0xff]
    %v68 = vld [vmem:[%s1 + $0x140] sm:$0xff]
    %v69 = vld [vmem:[%s1 + $0x148] sm:$0xff]
    %v70 = vld [vmem:[%s1 + $0x150] sm:$0xff]
    %v71 = vld [vmem:[%s1 + $0x158] sm:$0xff]
    %v72 = vld [vmem:[%s1 + $0x160] sm:$0xff]
    %v73 = vld [vmem:[%s1 + $0x168] sm:$0xff]
    %v74 = vld [vmem:[%s1 + $0x170] sm:$0xff]
    %v75 = vld [vmem:[%s1 + $0x178] sm:$0xff]
    %v76 = vld [vmem:[%s1 + $0x180] sm:$0xff]
    %v77 = vld [vmem:[%s1 + $0x188] sm:$0xff]
    %v78 = vld [vmem:[%s2] sm:$0x1]
    %v80 = vlaneseq
    %v81 = vshrl.u32 %v80, 7
    %v82 = vsub.s32 0, %v81
    %v83 = vrot.slane %v78, %v82
    %v86 = vcombine.high %v27, %v27
    %v88 = vunpack.c.l.s4 1983009808
    %v89 = vunpack.c.0.s8 %v88
    %v90 = vlaneseq
    %v91 = vshrl.u32 %v90, 7
    %v92 = vsub.s32 %v89, %v91
    %v93 = vrot.slane %v27, %v92
    %v95 = vunpack.c.l.s4 1983009808
    %v96 = vunpack.c.0.s8 %v95
    %v97 = vlaneseq
    %v98 = vshrl.u32 %v97, 7
    %v99 = vsub.s32 %v96, %v98
    %v100 = vrot.slane %v86, %v99
    %v101 = vcombine.high %v93, %v93
    %v102 = vcombine.high %v100, %v100
    %vm106 = vcmask 130048
    %v107 = vsel %vm106, %v102, 0
    %109 = vmatprep.subr.mxu0 0.0
    %110 = vmatpush1.msra.mxu0 %v28
    %111 = vmatprep.subr.mxu0 0.0
    %112 = vmatpush1.msra.mxu0 %v29
    %113 = vmatprep.subr.mxu0 0.0
    %114 = vmatpush1.msra.mxu0 %v30
    %115 = vmatprep.subr.mxu0 0.0
    %116 = vmatpush1.msra.mxu0 %v31
    %117 = vmatprep.subr.mxu0 0.0
    %118 = vmatpush1.msra.mxu0 %v32
    %119 = vmatprep.subr.mxu0 0.0
    %120 = vmatpush1.msra.mxu0 %v33
    %121 = vmatprep.subr.mxu0 0.0
    %122 = vmatpush1.msra.mxu0 %v34
    %123 = vmatprep.subr.mxu0 0.0
    %124 = vmatpush1.msra.mxu0 %v35
    %125 = vmatprep.subr.mxu0 0.0
    %126 = vmatpush1.msra.mxu0 %v36
    %127 = vmatprep.subr.mxu0 0.0
    %128 = vmatpush1.msra.mxu0 %v37
    %129 = vmatprep.subr.mxu0 0.0
    %130 = vmatpush1.msra.mxu0 %v38
    %131 = vmatprep.subr.mxu0 0.0
    %132 = vmatpush1.msra.mxu0 %v39
    %133 = vmatprep.subr.mxu0 0.0
    %134 = vmatpush1.msra.mxu0 %v40
    %135 = vmatprep.subr.mxu0 0.0
    %136 = vmatpush1.msra.mxu0 %v41
    %137 = vmatprep.subr.mxu0 0.0
    %138 = vmatpush1.msra.mxu0 %v42
    %139 = vmatprep.subr.mxu0 0.0
    %140 = vmatpush1.msra.mxu0 %v43
    %141 = vmatprep.subr.mxu0 0.0
    %142 = vmatpush1.msra.mxu0 %v44
    %143 = vmatprep.subr.mxu0 0.0
    %144 = vmatpush1.msra.mxu0 %v45
    %145 = vmatprep.subr.mxu0 0.0
    %146 = vmatpush1.msra.mxu0 %v46
    %147 = vmatprep.subr.mxu0 0.0
    %148 = vmatpush1.msra.mxu0 %v47
    %149 = vmatprep.subr.mxu0 0.0
    %150 = vmatpush1.msra.mxu0 %v48
    %151 = vmatprep.subr.mxu0 0.0
    %152 = vmatpush1.msra.mxu0 %v49
    %153 = vmatprep.subr.mxu0 0.0
    %154 = vmatpush1.msra.mxu0 %v50
    %155 = vmatprep.subr.mxu0 0.0
    %156 = vmatpush1.msra.mxu0 %v51
    %157 = vmatprep.subr.mxu0 0.0
    %158 = vmatpush1.msra.mxu0 %v52
    %159 = vmatprep.subr.mxu0 0.0
    %160 = vmatpush1.msra.mxu0 %v53
    %161 = vmatprep.subr.mxu0 0.0
    %162 = vmatpush1.msra.mxu0 %v54
    %163 = vmatprep.subr.mxu0 0.0
    %164 = vmatpush1.msra.mxu0 %v55
    %165 = vmatprep.subr.mxu0 0.0
    %166 = vmatpush1.msra.mxu0 %v56
    %167 = vmatprep.subr.mxu0 0.0
    %168 = vmatpush1.msra.mxu0 %v57
    %169 = vmatprep.subr.mxu0 0.0
    %170 = vmatpush1.msra.mxu0 %v58
    %171 = vmatprep.subr.mxu0 0.0
    %172 = vmatpush1.msra.mxu0 %v59
    %173 = vmatprep.mubr.f32.mxu0 %v101
    %174 = vmatmul.mubr.f32.gmra.mrb[0].mxu0 %v93
    %v175 = vpop.f32.mrb[0].mxu0
    %v176 = vadd.f32 %v83, %v175
    %v177 = vpop.f32.mrb[0].mxu0
    %178 = vdwg.mxu0
    %179 = vmatprep.subr.mxu0 0.0
    %180 = vmatpush1.msra.mxu0 %v60
    %181 = vmatprep.subr.mxu0 0.0
    %182 = vmatpush1.msra.mxu0 %v61
    %183 = vmatprep.subr.mxu0 0.0
    %184 = vmatpush1.msra.mxu0 %v62
    %185 = vmatprep.subr.mxu0 0.0
    %186 = vmatpush1.msra.mxu0 %v63
    %187 = vmatprep.subr.mxu0 0.0
    %188 = vmatpush1.msra.mxu0 %v64
    %189 = vmatprep.subr.mxu0 0.0
    %190 = vmatpush1.msra.mxu0 %v65
    %191 = vmatprep.subr.mxu0 0.0
    %192 = vmatpush1.msra.mxu0 %v66
    %193 = vmatprep.subr.mxu0 0.0
    %194 = vmatpush1.msra.mxu0 %v67
    %195 = vmatprep.subr.mxu0 0.0
    %196 = vmatpush1.msra.mxu0 %v68
    %197 = vmatprep.subr.mxu0 0.0
    %198 = vmatpush1.msra.mxu0 %v69
    %199 = vmatprep.subr.mxu0 0.0
    %200 = vmatpush1.msra.mxu0 %v70
    %201 = vmatprep.subr.mxu0 0.0
    %202 = vmatpush1.msra.mxu0 %v71
    %203 = vmatprep.subr.mxu0 0.0
    %204 = vmatpush1.msra.mxu0 %v72
    %205 = vmatprep.subr.mxu0 0.0
    %206 = vmatpush1.msra.mxu0 %v73
    %207 = vmatprep.subr.mxu0 0.0
    %208 = vmatpush1.msra.mxu0 %v74
    %209 = vmatprep.subr.mxu0 0.0
    %210 = vmatpush1.msra.mxu0 %v75
    %211 = vmatprep.subr.mxu0 0.0
    %212 = vmatpush1.msra.mxu0 %v76
    %213 = vmatprep.subr.mxu0 0.0
    %214 = vmatpush1.msra.mxu0 %v77
    %215 = vmatprep.subr.mxu0 0.0
    %216 = vmatpush1.msra.mxu0 0.0
    %217 = vmatprep.subr.mxu0 0.0
    %218 = vmatpush1.msra.mxu0 0.0
    %219 = vmatprep.subr.mxu0 0.0
    %220 = vmatpush1.msra.mxu0 0.0
    %221 = vmatprep.subr.mxu0 0.0
    %222 = vmatpush1.msra.mxu0 0.0
    %223 = vmatprep.subr.mxu0 0.0
    %224 = vmatpush1.msra.mxu0 0.0
    %225 = vmatprep.subr.mxu0 0.0
    %226 = vmatpush1.msra.mxu0 0.0
    %227 = vmatprep.subr.mxu0 0.0
    %228 = vmatpush1.msra.mxu0 0.0
    %229 = vmatprep.subr.mxu0 0.0
    %230 = vmatpush1.msra.mxu0 0.0
    %231 = vmatprep.subr.mxu0 0.0
    %232 = vmatpush1.msra.mxu0 0.0
    %233 = vmatprep.subr.mxu0 0.0
    %234 = vmatpush1.msra.mxu0 0.0
    %235 = vmatprep.subr.mxu0 0.0
    %236 = vmatpush1.msra.mxu0 0.0
    %237 = vmatprep.subr.mxu0 0.0
    %238 = vmatpush1.msra.mxu0 0.0
    %239 = vmatprep.subr.mxu0 0.0
    %240 = vmatpush1.msra.mxu0 0.0
    %241 = vmatprep.subr.mxu0 0.0
    %242 = vmatpush1.msra.mxu0 0.0
    %243 = vmatprep.mubr.f32.mxu0 %v107
    %244 = vmatmul.mubr.f32.gmra.mrb[0].mxu0 %v100
    %v245 = vpop.f32.mrb[0].mxu0
    %v246 = vadd.f32 %v176, %v245
    %v247 = vpop.f32.mrb[0].mxu0
    %248 = vdwg.mxu0
    %v249 = vmax.f32 %v246, 0.0
    %v250 = vld [vmem:[%s3] sm:$0xff]
    %v251 = vld [vmem:[%s3 + $0x8] sm:$0xff]
    %v252 = vld [vmem:[%s3 + $0x10] sm:$0xff]
    %v253 = vld [vmem:[%s3 + $0x18] sm:$0xff]
    %v254 = vld [vmem:[%s3 + $0x20] sm:$0xff]
    %v255 = vld [vmem:[%s3 + $0x28] sm:$0xff]
    %v256 = vld [vmem:[%s3 + $0x30] sm:$0xff]
    %v257 = vld [vmem:[%s3 + $0x38] sm:$0xff]
    %v258 = vld [vmem:[%s3 + $0x40] sm:$0xff]
    %v259 = vld [vmem:[%s3 + $0x48] sm:$0xff]
    %v260 = vld [vmem:[%s3 + $0x50] sm:$0xff]
    %v261 = vld [vmem:[%s3 + $0x58] sm:$0xff]
    %v262 = vld [vmem:[%s3 + $0x60] sm:$0xff]
    %v263 = vld [vmem:[%s3 + $0x68] sm:$0xff]
    %v264 = vld [vmem:[%s3 + $0x70] sm:$0xff]
    %v265 = vld [vmem:[%s3 + $0x78] sm:$0xff]
    %v266 = vld [vmem:[%s4] sm:$0x1]
    %v268 = vlaneseq
    %v269 = vshrl.u32 %v268, 7
    %v270 = vsub.s32 0, %v269
    %v271 = vrot.slane %v266, %v270
    %273 = vmatprep.subr.mxu0 0.0
    %274 = vmatpush1.msra.mxu0 %v250
    %275 = vmatprep.subr.mxu0 0.0
    %276 = vmatpush1.msra.mxu0 %v251
    %277 = vmatprep.subr.mxu0 0.0
    %278 = vmatpush1.msra.mxu0 %v252
    %279 = vmatprep.subr.mxu0 0.0
    %280 = vmatpush1.msra.mxu0 %v253
    %281 = vmatprep.subr.mxu0 0.0
    %282 = vmatpush1.msra.mxu0 %v254
    %283 = vmatprep.subr.mxu0 0.0
    %284 = vmatpush1.msra.mxu0 %v255
    %285 = vmatprep.subr.mxu0 0.0
    %286 = vmatpush1.msra.mxu0 %v256
    %287 = vmatprep.subr.mxu0 0.0
    %288 = vmatpush1.msra.mxu0 %v257
    %289 = vmatprep.subr.mxu0 0.0
    %290 = vmatpush1.msra.mxu0 %v258
    %291 = vmatprep.subr.mxu0 0.0
    %292 = vmatpush1.msra.mxu0 %v259
    %293 = vmatprep.subr.mxu0 0.0
    %294 = vmatpush1.msra.mxu0 %v260
    %295 = vmatprep.subr.mxu0 0.0
    %296 = vmatpush1.msra.mxu0 %v261
    %297 = vmatprep.subr.mxu0 0.0
    %298 = vmatpush1.msra.mxu0 %v262
    %299 = vmatprep.subr.mxu0 0.0
    %300 = vmatpush1.msra.mxu0 %v263
    %301 = vmatprep.subr.mxu0 0.0
    %302 = vmatpush1.msra.mxu0 %v264
    %303 = vmatprep.subr.mxu0 0.0
    %304 = vmatpush1.msra.mxu0 %v265
    %305 = vmatprep.subr.mxu0 0.0
    %306 = vmatpush1.msra.mxu0 0.0
    %307 = vmatprep.subr.mxu0 0.0
    %308 = vmatpush1.msra.mxu0 0.0
    %309 = vmatprep.subr.mxu0 0.0
    %310 = vmatpush1.msra.mxu0 0.0
    %311 = vmatprep.subr.mxu0 0.0
    %312 = vmatpush1.msra.mxu0 0.0
    %313 = vmatprep.subr.mxu0 0.0
    %314 = vmatpush1.msra.mxu0 0.0
    %315 = vmatprep.subr.mxu0 0.0
    %316 = vmatpush1.msra.mxu0 0.0
    %317 = vmatprep.subr.mxu0 0.0
    %318 = vmatpush1.msra.mxu0 0.0
    %319 = vmatprep.subr.mxu0 0.0
    %320 = vmatpush1.msra.mxu0 0.0
    %321 = vmatprep.subr.mxu0 0.0
    %322 = vmatpush1.msra.mxu0 0.0
    %323 = vmatprep.subr.mxu0 0.0
    %324 = vmatpush1.msra.mxu0 0.0
    %325 = vmatprep.subr.mxu0 0.0
    %326 = vmatpush1.msra.mxu0 0.0
    %327 = vmatprep.subr.mxu0 0.0
    %328 = vmatpush1.msra.mxu0 0.0
    %329 = vmatprep.subr.mxu0 0.0
    %330 = vmatpush1.msra.mxu0 0.0
    %331 = vmatprep.subr.mxu0 0.0
    %332 = vmatpush1.msra.mxu0 0.0
    %333 = vmatprep.subr.mxu0 0.0
    %334 = vmatpush1.msra.mxu0 0.0
    %335 = vmatprep.subr.mxu0 0.0
    %336 = vmatpush1.msra.mxu0 0.0
    %337 = vmatprep.mubr.f32.mxu0 0.0
    %338 = vmatmul.mubr.f32.gmra.mrb[0].mxu0 %v249
    %v339 = vpop.f32.mrb[0].mxu0
    %v340 = vadd.f32 %v271, %v339
    %v341 = vpop.f32.mrb[0].mxu0
    %342 = vdwg.mxu0
    %v343 = vmax.f32 %v340, 0.0
    %v344 = vld [vmem:[%s5] sm:$0xff]
    %v345 = vld [vmem:[%s5 + $0x8] sm:$0xff]
    %v346 = vld [vmem:[%s5 + $0x10] sm:$0xff]
    %v347 = vld [vmem:[%s5 + $0x18] sm:$0xff]
    %v348 = vld [vmem:[%s5 + $0x20] sm:$0xff]
    %v349 = vld [vmem:[%s5 + $0x28] sm:$0xff]
    %v350 = vld [vmem:[%s5 + $0x30] sm:$0xff]
    %v351 = vld [vmem:[%s5 + $0x38] sm:$0xff]
    %v352 = vld [vmem:[%s5 + $0x40] sm:$0xff]
    %v353 = vld [vmem:[%s5 + $0x48] sm:$0xff]
    %v354 = vld [vmem:[%s5 + $0x50] sm:$0xff]
    %v355 = vld [vmem:[%s5 + $0x58] sm:$0xff]
    %v356 = vld [vmem:[%s5 + $0x60] sm:$0xff]
    %v357 = vld [vmem:[%s5 + $0x68] sm:$0xff]
    %v358 = vld [vmem:[%s5 + $0x70] sm:$0xff]
    %v359 = vld [vmem:[%s5 + $0x78] sm:$0xff]
    %v360 = vld [vmem:[%s6] sm:$0x1]
    %v362 = vlaneseq
    %v363 = vshrl.u32 %v362, 7
    %v364 = vsub.s32 0, %v363
    %v365 = vrot.slane %v360, %v364
    %367 = vmatprep.subr.mxu0 0.0
    %368 = vmatpush1.msra.mxu0 %v344
    %369 = vmatprep.subr.mxu0 0.0
    %370 = vmatpush1.msra.mxu0 %v345
    %371 = vmatprep.subr.mxu0 0.0
    %372 = vmatpush1.msra.mxu0 %v346
    %373 = vmatprep.subr.mxu0 0.0
    %374 = vmatpush1.msra.mxu0 %v347
    %375 = vmatprep.subr.mxu0 0.0
    %376 = vmatpush1.msra.mxu0 %v348
    %377 = vmatprep.subr.mxu0 0.0
    %378 = vmatpush1.msra.mxu0 %v349
    %379 = vmatprep.subr.mxu0 0.0
    %380 = vmatpush1.msra.mxu0 %v350
    %381 = vmatprep.subr.mxu0 0.0
    %382 = vmatpush1.msra.mxu0 %v351
    %383 = vmatprep.subr.mxu0 0.0
    %384 = vmatpush1.msra.mxu0 %v352
    %385 = vmatprep.subr.mxu0 0.0
    %386 = vmatpush1.msra.mxu0 %v353
    %387 = vmatprep.subr.mxu0 0.0
    %388 = vmatpush1.msra.mxu0 %v354
    %389 = vmatprep.subr.mxu0 0.0
    %390 = vmatpush1.msra.mxu0 %v355
    %391 = vmatprep.subr.mxu0 0.0
    %392 = vmatpush1.msra.mxu0 %v356
    %393 = vmatprep.subr.mxu0 0.0
    %394 = vmatpush1.msra.mxu0 %v357
    %395 = vmatprep.subr.mxu0 0.0
    %396 = vmatpush1.msra.mxu0 %v358
    %397 = vmatprep.subr.mxu0 0.0
    %398 = vmatpush1.msra.mxu0 %v359
    %399 = vmatprep.subr.mxu0 0.0
    %400 = vmatpush1.msra.mxu0 0.0
    %401 = vmatprep.subr.mxu0 0.0
    %402 = vmatpush1.msra.mxu0 0.0
    %403 = vmatprep.subr.mxu0 0.0
    %404 = vmatpush1.msra.mxu0 0.0
    %405 = vmatprep.subr.mxu0 0.0
    %406 = vmatpush1.msra.mxu0 0.0
    %407 = vmatprep.subr.mxu0 0.0
    %408 = vmatpush1.msra.mxu0 0.0
    %409 = vmatprep.subr.mxu0 0.0
    %410 = vmatpush1.msra.mxu0 0.0
    %411 = vmatprep.subr.mxu0 0.0
    %412 = vmatpush1.msra.mxu0 0.0
    %413 = vmatprep.subr.mxu0 0.0
    %414 = vmatpush1.msra.mxu0 0.0
    %415 = vmatprep.subr.mxu0 0.0
    %416 = vmatpush1.msra.mxu0 0.0
    %417 = vmatprep.subr.mxu0 0.0
    %418 = vmatpush1.msra.mxu0 0.0
    %419 = vmatprep.subr.mxu0 0.0
    %420 = vmatpush1.msra.mxu0 0.0
    %421 = vmatprep.subr.mxu0 0.0
    %422 = vmatpush1.msra.mxu0 0.0
    %423 = vmatprep.subr.mxu0 0.0
    %424 = vmatpush1.msra.mxu0 0.0
    %425 = vmatprep.subr.mxu0 0.0
    %426 = vmatpush1.msra.mxu0 0.0
    %427 = vmatprep.subr.mxu0 0.0
    %428 = vmatpush1.msra.mxu0 0.0
    %429 = vmatprep.subr.mxu0 0.0
    %430 = vmatpush1.msra.mxu0 0.0
    %431 = vmatprep.mubr.f32.mxu0 0.0
    %432 = vmatmul.mubr.f32.gmra.mrb[0].mxu0 %v343
    %v433 = vpop.f32.mrb[0].mxu0
    %v434 = vadd.f32 %v365, %v433
    %v435 = vpop.f32.mrb[0].mxu0
    %436 = vdwg.mxu0
    %437 = vst [vmem:[#allocation2] sm:$0x3] %v434
    // Predicated region
    $region30: #{lenet5_forward.5} parent=1 // pred_check
      _
    $region31: #{lenet5_forward.5} parent=1 // pred_check_branch
      %439 = sbr.rel (0) target = $region33
    $region32: #{lenet5_forward.5} parent=1 // pred_region
      %s441 = ssub.s32 32, 32
      %442 = vsyncadd [#allocation3], %s441
      %s444 = sshll.u32 [#allocation2], 4
      %s445 = int_to_ptr.vmem [resolvable:$true] %s444
      %447 = dma.vmem_to_hbm [thread:$0]  %s445, 32, %s7, [#allocation3]
    $region33: #{lenet5_forward.5} parent=1 // pred_fallthru
      _
    // Predicated region
    $region34: #{lenet5_forward.5} parent=1 // pred_check
      _
    $region35: #{lenet5_forward.5} parent=1 // pred_check_branch
      %449 = sbr.rel (0) target = $region37
    $region36: #{lenet5_forward.5} parent=1 // pred_region
      %450 = dma.done [#allocation3], 32
    $region37: #{lenet5_forward.5} parent=1 // pred_fallthru
      _
    %451 = vsyncpa [#allocation3], 1

// kernel: lenet5_forward.4
$region0: #{lenet5_forward.4}
  #allocation0 [shape = 'u32[]', space=smem, size = 0x4, offset = 0x4, fixed_abs, tag = 'smem constant byte address 0x4 - core index']
  #allocation1 [shape = 'u32[144,128]{1,0:T(1,128)}', space=vmem, size = 0x12000, scoped, tag = 'internal scratch']
  %s0 = inlined_call_operand.vmem [shape: f32[4,64,150], index: 0, kind: input, shape index: {}]
  %s1 = inlined_call_operand.vmem [shape: f32[150,128], index: 1, kind: input, shape index: {}]
  %s2 = inlined_call_operand.vmem [shape: f32[1,128], index: 2, kind: input, shape index: {}]
  %s3 = inlined_call_operand.vmem [shape: f32[64,128], index: 3, kind: output, shape index: {}]
  %s4 = sld [smem:[#allocation0]]
  $region22: #{lenet5_forward.4} parent=0
    _
  %s6 = ssub.s32 1, %s4
  %s7 = scalar_select 0, %s6, %s4
  // Predicated region
  $region2: #{lenet5_forward.4} parent=0 // pred_check
    _
  $region3: #{lenet5_forward.4} parent=0 // pred_check_branch
    %9 = sbr.rel (0) target = $region5
  $region4: #{lenet5_forward.4} parent=0 // pred_region
    _
  $region5: #{lenet5_forward.4} parent=0 // pred_fallthru
    _
  // Predicated region
  $region6: #{lenet5_forward.4} parent=0 // pred_check
    _
  $region7: #{lenet5_forward.4} parent=0 // pred_check_branch
    %11 = sbr.rel (0) target = $region9
  $region8: #{lenet5_forward.4} parent=0 // pred_region
    _
  $region9: #{lenet5_forward.4} parent=0 // pred_fallthru
    _
  // Predicated region
  $region10: #{lenet5_forward.4} parent=0 // pred_check
    _
  $region11: #{lenet5_forward.4} parent=0 // pred_check_branch
    %13 = sbr.rel (0) target = $region13
  $region12: #{lenet5_forward.4} parent=0 // pred_region
    _
  $region13: #{lenet5_forward.4} parent=0 // pred_fallthru
    _
  %v14 = vld [vmem:[%s1] sm:$0xff]
  %v15 = vld [vmem:[%s1 + $0x8] sm:$0xff]
  %v16 = vld [vmem:[%s1 + $0x10] sm:$0xff]
  %v17 = vld [vmem:[%s1 + $0x18] sm:$0xff]
  %v18 = vld [vmem:[%s1 + $0x20] sm:$0xff]
  %v19 = vld [vmem:[%s1 + $0x28] sm:$0xff]
  %v20 = vld [vmem:[%s1 + $0x30] sm:$0xff]
  %v21 = vld [vmem:[%s1 + $0x38] sm:$0xff]
  %v22 = vld [vmem:[%s1 + $0x40] sm:$0xff]
  %v23 = vld [vmem:[%s1 + $0x48] sm:$0xff]
  %v24 = vld [vmem:[%s1 + $0x50] sm:$0xff]
  %v25 = vld [vmem:[%s1 + $0x58] sm:$0xff]
  %v26 = vld [vmem:[%s1 + $0x60] sm:$0xff]
  %v27 = vld [vmem:[%s1 + $0x68] sm:$0xff]
  %v28 = vld [vmem:[%s1 + $0x70] sm:$0xff]
  %v29 = vld [vmem:[%s1 + $0x78] sm:$0xff]
  %v30 = vld [vmem:[%s1 + $0x80] sm:$0xff]
  %v31 = vld [vmem:[%s1 + $0x88] sm:$0xff]
  %v32 = vld [vmem:[%s1 + $0x90] sm:$0x3f]
  %v33 = vld [vmem:[%s0] sm:$0xff]
  %v34 = vld [vmem:[%s0 + $0x8] sm:$0xff]
  %v35 = vld [vmem:[%s0 + $0x10] sm:$0xff]
  %v36 = vld [vmem:[%s0 + $0x18] sm:$0xff]
  %v37 = vld [vmem:[%s0 + $0x20] sm:$0xff]
  %v38 = vld [vmem:[%s0 + $0x28] sm:$0xff]
  %v39 = vld [vmem:[%s0 + $0x30] sm:$0xff]
  %v40 = vld [vmem:[%s0 + $0x38] sm:$0xff]
  %v41 = vld [vmem:[%s0 + $0x40] sm:$0xff]
  %v42 = vld [vmem:[%s0 + $0x48] sm:$0xff]
  %v43 = vld [vmem:[%s0 + $0x50] sm:$0xff]
  %v44 = vld [vmem:[%s0 + $0x58] sm:$0xff]
  %v45 = vld [vmem:[%s0 + $0x60] sm:$0xff]
  %v46 = vld [vmem:[%s0 + $0x68] sm:$0xff]
  %v47 = vld [vmem:[%s0 + $0x70] sm:$0xff]
  %v48 = vld [vmem:[%s0 + $0x78] sm:$0xff]
  %vm49 = vcmask 179200
  %v51 = vsel %vm49, %v34, 0
  %v54 = vsel %vm49, %v36, 0
  %v57 = vsel %vm49, %v38, 0
  %v60 = vsel %vm49, %v40, 0
  %v63 = vsel %vm49, %v42, 0
  %v66 = vsel %vm49, %v44, 0
  %v69 = vsel %vm49, %v46, 0
  %v72 = vsel %vm49, %v48, 0
  %vm74 = vcmask 1045504
  %v76 = vsel %vm74, %v32, 0
  %78 = vmatprep.subr.mxu0 0.0
  %79 = vmatpush1.msra.mxu0 %v14
  %80 = vmatprep.subr.mxu0 0.0
  %81 = vmatpush1.msra.mxu0 %v15
  %82 = vmatprep.subr.mxu0 0.0
  %83 = vmatpush1.msra.mxu0 %v16
  %84 = vmatprep.subr.mxu0 0.0
  %85 = vmatpush1.msra.mxu0 %v17
  %86 = vmatprep.subr.mxu0 0.0
  %87 = vmatpush1.msra.mxu0 %v18
  %88 = vmatprep.subr.mxu0 0.0
  %89 = vmatpush1.msra.mxu0 %v19
  %90 = vmatprep.subr.mxu0 0.0
  %91 = vmatpush1.msra.mxu0 %v20
  %92 = vmatprep.subr.mxu0 0.0
  %93 = vmatpush1.msra.mxu0 %v21
  %94 = vmatprep.subr.mxu0 0.0
  %95 = vmatpush1.msra.mxu0 %v22
  %96 = vmatprep.subr.mxu0 0.0
  %97 = vmatpush1.msra.mxu0 %v23
  %98 = vmatprep.subr.mxu0 0.0
  %99 = vmatpush1.msra.mxu0 %v24
  %100 = vmatprep.subr.mxu0 0.0
  %101 = vmatpush1.msra.mxu0 %v25
  %102 = vmatprep.subr.mxu0 0.0
  %103 = vmatpush1.msra.mxu0 %v26
  %104 = vmatprep.subr.mxu0 0.0
  %105 = vmatpush1.msra.mxu0 %v27
  %106 = vmatprep.subr.mxu0 0.0
  %107 = vmatpush1.msra.mxu0 %v28
  %108 = vmatprep.subr.mxu0 0.0
  %109 = vmatpush1.msra.mxu0 %v29
  %110 = vmatprep.subr.mxu0 0.0
  %111 = vmatpush1.msra.mxu0 %v30
  %112 = vmatprep.subr.mxu0 0.0
  %113 = vmatpush1.msra.mxu0 %v31
  %114 = vmatprep.subr.mxu0 0.0
  %115 = vmatpush1.msra.mxu0 %v76
  %116 = vmatprep.subr.mxu0 0.0
  %117 = vmatpush1.msra.mxu0 0.0
  %118 = vmatprep.subr.mxu0 0.0
  %119 = vmatpush1.msra.mxu0 0.0
  %120 = vmatprep.subr.mxu0 0.0
  %121 = vmatpush1.msra.mxu0 0.0
  %122 = vmatprep.subr.mxu0 0.0
  %123 = vmatpush1.msra.mxu0 0.0
  %124 = vmatprep.subr.mxu0 0.0
  %125 = vmatpush1.msra.mxu0 0.0
  %126 = vmatprep.subr.mxu0 0.0
  %127 = vmatpush1.msra.mxu0 0.0
  %128 = vmatprep.subr.mxu0 0.0
  %129 = vmatpush1.msra.mxu0 0.0
  %130 = vmatprep.subr.mxu0 0.0
  %131 = vmatpush1.msra.mxu0 0.0
  %132 = vmatprep.subr.mxu0 0.0
  %133 = vmatpush1.msra.mxu0 0.0
  %134 = vmatprep.subr.mxu0 0.0
  %135 = vmatpush1.msra.mxu0 0.0
  %136 = vmatprep.subr.mxu0 0.0
  %137 = vmatpush1.msra.mxu0 0.0
  %138 = vmatprep.subr.mxu0 0.0
  %139 = vmatpush1.msra.mxu0 0.0
  %140 = vmatprep.subr.mxu0 0.0
  %141 = vmatpush1.msra.mxu0 0.0
  %142 = vmatprep.mubr.f32.mxu0 %v51
  %143 = vmatmul.mubr.f32.gmra.mrb[0].mxu0 %v33
  %v144 = vpop.f32.mrb[0].mxu0
  %v145 = vadd.f32 0.0, %v144
  %v146 = vpop.f32.mrb[0].mxu0
  %147 = vmatprep.mubr.f32.mxu0 %v54
  %148 = vmatmul.mubr.f32.gmra.mrb[0].mxu0 %v35
  %v149 = vpop.f32.mrb[0].mxu0
  %v150 = vadd.f32 0.0, %v149
  %v151 = vpop.f32.mrb[0].mxu0
  %152 = vmatprep.mubr.f32.mxu0 %v57
  %153 = vmatmul.mubr.f32.gmra.mrb[0].mxu0 %v37
  %v154 = vpop.f32.mrb[0].mxu0
  %v155 = vadd.f32 0.0, %v154
  %v156 = vpop.f32.mrb[0].mxu0
  %157 = vmatprep.mubr.f32.mxu0 %v60
  %158 = vmatmul.mubr.f32.gmra.mrb[0].mxu0 %v39
  %v159 = vpop.f32.mrb[0].mxu0
  %v160 = vadd.f32 0.0, %v159
  %v161 = vpop.f32.mrb[0].mxu0
  %162 = vmatprep.mubr.f32.mxu0 %v63
  %163 = vmatmul.mubr.f32.gmra.mrb[0].mxu0 %v41
  %v164 = vpop.f32.mrb[0].mxu0
  %v165 = vadd.f32 0.0, %v164
  %v166 = vpop.f32.mrb[0].mxu0
  %167 = vmatprep.mubr.f32.mxu0 %v66
  %168 = vmatmul.mubr.f32.gmra.mrb[0].mxu0 %v43
  %v169 = vpop.f32.mrb[0].mxu0
  %v170 = vadd.f32 0.0, %v169
  %v171 = vpop.f32.mrb[0].mxu0
  %172 = vmatprep.mubr.f32.mxu0 %v69
  %173 = vmatmul.mubr.f32.gmra.mrb[0].mxu0 %v45
  %v174 = vpop.f32.mrb[0].mxu0
  %v175 = vadd.f32 0.0, %v174
  %v176 = vpop.f32.mrb[0].mxu0
  %177 = vmatprep.mubr.f32.mxu0 %v72
  %178 = vmatmul.mubr.f32.gmra.mrb[0].mxu0 %v47
  %v179 = vpop.f32.mrb[0].mxu0
  %v180 = vadd.f32 0.0, %v179
  %v181 = vpop.f32.mrb[0].mxu0
  %182 = vdwg.mxu0
  %s183 = scalar_lea.vmem %s0, 128
  %v184 = vld [vmem:[%s183] sm:$0xff]
  %v185 = vld [vmem:[%s183 + $0x8] sm:$0xff]
  %v186 = vld [vmem:[%s183 + $0x10] sm:$0xff]
  %v187 = vld [vmem:[%s183 + $0x18] sm:$0xff]
  %v188 = vld [vmem:[%s183 + $0x20] sm:$0xff]
  %v189 = vld [vmem:[%s183 + $0x28] sm:$0xff]
  %v190 = vld [vmem:[%s183 + $0x30] sm:$0xff]
  %v191 = vld [vmem:[%s183 + $0x38] sm:$0xff]
  %v192 = vld [vmem:[%s183 + $0x40] sm:$0xff]
  %v193 = vld [vmem:[%s183 + $0x48] sm:$0xff]
  %v194 = vld [vmem:[%s183 + $0x50] sm:$0xff]
  %v195 = vld [vmem:[%s183 + $0x58] sm:$0xff]
  %v196 = vld [vmem:[%s183 + $0x60] sm:$0xff]
  %v197 = vld [vmem:[%s183 + $0x68] sm:$0xff]
  %v198 = vld [vmem:[%s183 + $0x70] sm:$0xff]
  %v199 = vld [vmem:[%s183 + $0x78] sm:$0xff]
  %v201 = vsel %vm49, %v185, 0
  %v204 = vsel %vm49, %v187, 0
  %v207 = vsel %vm49, %v189, 0
  %v210 = vsel %vm49, %v191, 0
  %v213 = vsel %vm49, %v193, 0
  %v216 = vsel %vm49, %v195, 0
  %v219 = vsel %vm49, %v197, 0
  %v222 = vsel %vm49, %v199, 0
  %224 = vmatprep.subr.mxu0 0.0
  %225 = vmatpush1.msra.mxu0 %v14
  %226 = vmatprep.subr.mxu0 0.0
  %227 = vmatpush1.msra.mxu0 %v15
  %228 = vmatprep.subr.mxu0 0.0
  %229 = vmatpush1.msra.mxu0 %v16
  %230 = vmatprep.subr.mxu0 0.0
  %231 = vmatpush1.msra.mxu0 %v17
  %232 = vmatprep.subr.mxu0 0.0
  %233 = vmatpush1.msra.mxu0 %v18
  %234 = vmatprep.subr.mxu0 0.0
  %235 = vmatpush1.msra.mxu0 %v19
  %236 = vmatprep.subr.mxu0 0.0
  %237 = vmatpush1.msra.mxu0 %v20
  %238 = vmatprep.subr.mxu0 0.0
  %239 = vmatpush1.msra.mxu0 %v21
  %240 = vmatprep.subr.mxu0 0.0
  %241 = vmatpush1.msra.mxu0 %v22
  %242 = vmatprep.subr.mxu0 0.0
  %243 = vmatpush1.msra.mxu0 %v23
  %244 = vmatprep.subr.mxu0 0.0
  %245 = vmatpush1.msra.mxu0 %v24
  %246 = vmatprep.subr.mxu0 0.0
  %247 = vmatpush1.msra.mxu0 %v25
  %248 = vmatprep.subr.mxu0 0.0
  %249 = vmatpush1.msra.mxu0 %v26
  %250 = vmatprep.subr.mxu0 0.0
  %251 = vmatpush1.msra.mxu0 %v27
  %252 = vmatprep.subr.mxu0 0.0
  %253 = vmatpush1.msra.mxu0 %v28
  %254 = vmatprep.subr.mxu0 0.0
  %255 = vmatpush1.msra.mxu0 %v29
  %256 = vmatprep.subr.mxu0 0.0
  %257 = vmatpush1.msra.mxu0 %v30
  %258 = vmatprep.subr.mxu0 0.0
  %259 = vmatpush1.msra.mxu0 %v31
  %260 = vmatprep.subr.mxu0 0.0
  %261 = vmatpush1.msra.mxu0 %v76
  %262 = vmatprep.subr.mxu0 0.0
  %263 = vmatpush1.msra.mxu0 0.0
  %264 = vmatprep.subr.mxu0 0.0
  %265 = vmatpush1.msra.mxu0 0.0
  %266 = vmatprep.subr.mxu0 0.0
  %267 = vmatpush1.msra.mxu0 0.0
  %268 = vmatprep.subr.mxu0 0.0
  %269 = vmatpush1.msra.mxu0 0.0
  %270 = vmatprep.subr.mxu0 0.0
  %271 = vmatpush1.msra.mxu0 0.0
  %272 = vmatprep.subr.mxu0 0.0
  %273 = vmatpush1.msra.mxu0 0.0
  %274 = vmatprep.subr.mxu0 0.0
  %275 = vmatpush1.msra.mxu0 0.0
  %276 = vmatprep.subr.mxu0 0.0
  %277 = vmatpush1.msra.mxu0 0.0
  %278 = vmatprep.subr.mxu0 0.0
  %279 = vmatpush1.msra.mxu0 0.0
  %280 = vmatprep.subr.mxu0 0.0
  %281 = vmatpush1.msra.mxu0 0.0
  %282 = vmatprep.subr.mxu0 0.0
  %283 = vmatpush1.msra.mxu0 0.0
  %284 = vmatprep.subr.mxu0 0.0
  %285 = vmatpush1.msra.mxu0 0.0
  %286 = vmatprep.subr.mxu0 0.0
  %287 = vmatpush1.msra.mxu0 0.0
  %288 = vmatprep.mubr.f32.mxu0 %v201
  %289 = vmatmul.mubr.f32.gmra.mrb[0].mxu0 %v184
  %v290 = vpop.f32.mrb[0].mxu0
  %v291 = vadd.f32 0.0, %v290
  %v292 = vpop.f32.mrb[0].mxu0
  %293 = vmatprep.mubr.f32.mxu0 %v204
  %294 = vmatmul.mubr.f32.gmra.mrb[0].mxu0 %v186
  %v295 = vpop.f32.mrb[0].mxu0
  %v296 = vadd.f32 0.0, %v295
  %v297 = vpop.f32.mrb[0].mxu0
  %298 = vmatprep.mubr.f32.mxu0 %v207
  %299 = vmatmul.mubr.f32.gmra.mrb[0].mxu0 %v188
  %v300 = vpop.f32.mrb[0].mxu0
  %v301 = vadd.f32 0.0, %v300
  %v302 = vpop.f32.mrb[0].mxu0
  %303 = vmatprep.mubr.f32.mxu0 %v210
  %304 = vmatmul.mubr.f32.gmra.mrb[0].mxu0 %v190
  %v305 = vpop.f32.mrb[0].mxu0
  %v306 = vadd.f32 0.0, %v305
  %v307 = vpop.f32.mrb[0].mxu0
  %308 = vmatprep.mubr.f32.mxu0 %v213
  %309 = vmatmul.mubr.f32.gmra.mrb[0].mxu0 %v192
  %v310 = vpop.f32.mrb[0].mxu0
  %v311 = vadd.f32 0.0, %v310
  %v312 = vpop.f32.mrb[0].mxu0
  %313 = vmatprep.mubr.f32.mxu0 %v216
  %314 = vmatmul.mubr.f32.gmra.mrb[0].mxu0 %v194
  %v315 = vpop.f32.mrb[0].mxu0
  %v316 = vadd.f32 0.0, %v315
  %v317 = vpop.f32.mrb[0].mxu0
  %318 = vmatprep.mubr.f32.mxu0 %v219
  %319 = vmatmul.mubr.f32.gmra.mrb[0].mxu0 %v196
  %v320 = vpop.f32.mrb[0].mxu0
  %v321 = vadd.f32 0.0, %v320
  %v322 = vpop.f32.mrb[0].mxu0
  %323 = vmatprep.mubr.f32.mxu0 %v222
  %324 = vmatmul.mubr.f32.gmra.mrb[0].mxu0 %v198
  %v325 = vpop.f32.mrb[0].mxu0
  %v326 = vadd.f32 0.0, %v325
  %v327 = vpop.f32.mrb[0].mxu0
  %328 = vdwg.mxu0
  %v329 = vmax.f32 %v145, %v291
  %v330 = vmax.f32 %v150, %v296
  %v331 = vmax.f32 %v155, %v301
  %v332 = vmax.f32 %v160, %v306
  %v333 = vmax.f32 %v165, %v311
  %v334 = vmax.f32 %v170, %v316
  %v335 = vmax.f32 %v175, %v321
  %v336 = vmax.f32 %v180, %v326
  %s337 = scalar_lea.vmem %s0, 256
  %v338 = vld [vmem:[%s337] sm:$0xff]
  %v339 = vld [vmem:[%s337 + $0x8] sm:$0xff]
  %v340 = vld [vmem:[%s337 + $0x10] sm:$0xff]
  %v341 = vld [vmem:[%s337 + $0x18] sm:$0xff]
  %v342 = vld [vmem:[%s337 + $0x20] sm:$0xff]
  %v343 = vld [vmem:[%s337 + $0x28] sm:$0xff]
  %v344 = vld [vmem:[%s337 + $0x30] sm:$0xff]
  %v345 = vld [vmem:[%s337 + $0x38] sm:$0xff]
  %v346 = vld [vmem:[%s337 + $0x40] sm:$0xff]
  %v347 = vld [vmem:[%s337 + $0x48] sm:$0xff]
  %v348 = vld [vmem:[%s337 + $0x50] sm:$0xff]
  %v349 = vld [vmem:[%s337 + $0x58] sm:$0xff]
  %v350 = vld [vmem:[%s337 + $0x60] sm:$0xff]
  %v351 = vld [vmem:[%s337 + $0x68] sm:$0xff]
  %v352 = vld [vmem:[%s337 + $0x70] sm:$0xff]
  %v353 = vld [vmem:[%s337 + $0x78] sm:$0xff]
  %v355 = vsel %vm49, %v339, 0
  %v358 = vsel %vm49, %v341, 0
  %v361 = vsel %vm49, %v343, 0
  %v364 = vsel %vm49, %v345, 0
  %v367 = vsel %vm49, %v347, 0
  %v370 = vsel %vm49, %v349, 0
  %v373 = vsel %vm49, %v351, 0
  %v376 = vsel %vm49, %v353, 0
  %378 = vmatprep.subr.mxu0 0.0
  %379 = vmatpush1.msra.mxu0 %v14
  %380 = vmatprep.subr.mxu0 0.0
  %381 = vmatpush1.msra.mxu0 %v15
  %382 = vmatprep.subr.mxu0 0.0
  %383 = vmatpush1.msra.mxu0 %v16
  %384 = vmatprep.subr.mxu0 0.0
  %385 = vmatpush1.msra.mxu0 %v17
  %386 = vmatprep.subr.mxu0 0.0
  %387 = vmatpush1.msra.mxu0 %v18
  %388 = vmatprep.subr.mxu0 0.0
  %389 = vmatpush1.msra.mxu0 %v19
  %390 = vmatprep.subr.mxu0 0.0
  %391 = vmatpush1.msra.mxu0 %v20
  %392 = vmatprep.subr.mxu0 0.0
  %393 = vmatpush1.msra.mxu0 %v21
  %394 = vmatprep.subr.mxu0 0.0
  %395 = vmatpush1.msra.mxu0 %v22
  %396 = vmatprep.subr.mxu0 0.0
  %397 = vmatpush1.msra.mxu0 %v23
  %398 = vmatprep.subr.mxu0 0.0
  %399 = vmatpush1.msra.mxu0 %v24
  %400 = vmatprep.subr.mxu0 0.0
  %401 = vmatpush1.msra.mxu0 %v25
  %402 = vmatprep.subr.mxu0 0.0
  %403 = vmatpush1.msra.mxu0 %v26
  %404 = vmatprep.subr.mxu0 0.0
  %405 = vmatpush1.msra.mxu0 %v27
  %406 = vmatprep.subr.mxu0 0.0
  %407 = vmatpush1.msra.mxu0 %v28
  %408 = vmatprep.subr.mxu0 0.0
  %409 = vmatpush1.msra.mxu0 %v29
  %410 = vmatprep.subr.mxu0 0.0
  %411 = vmatpush1.msra.mxu0 %v30
  %412 = vmatprep.subr.mxu0 0.0
  %413 = vmatpush1.msra.mxu0 %v31
  %414 = vmatprep.subr.mxu0 0.0
  %415 = vmatpush1.msra.mxu0 %v76
  %416 = vmatprep.subr.mxu0 0.0
  %417 = vmatpush1.msra.mxu0 0.0
  %418 = vmatprep.subr.mxu0 0.0
  %419 = vmatpush1.msra.mxu0 0.0
  %420 = vmatprep.subr.mxu0 0.0
  %421 = vmatpush1.msra.mxu0 0.0
  %422 = vmatprep.subr.mxu0 0.0
  %423 = vmatpush1.msra.mxu0 0.0
  %424 = vmatprep.subr.mxu0 0.0
  %425 = vmatpush1.msra.mxu0 0.0
  %426 = vmatprep.subr.mxu0 0.0
  %427 = vmatpush1.msra.mxu0 0.0
  %428 = vmatprep.subr.mxu0 0.0
  %429 = vmatpush1.msra.mxu0 0.0
  %430 = vmatprep.subr.mxu0 0.0
  %431 = vmatpush1.msra.mxu0 0.0
  %432 = vmatprep.subr.mxu0 0.0
  %433 = vmatpush1.msra.mxu0 0.0
  %434 = vmatprep.subr.mxu0 0.0
  %435 = vmatpush1.msra.mxu0 0.0
  %436 = vmatprep.subr.mxu0 0.0
  %437 = vmatpush1.msra.mxu0 0.0
  %438 = vmatprep.subr.mxu0 0.0
  %439 = vmatpush1.msra.mxu0 0.0
  %440 = vmatprep.subr.mxu0 0.0
  %441 = vmatpush1.msra.mxu0 0.0
  %442 = vmatprep.mubr.f32.mxu0 %v355
  %443 = vmatmul.mubr.f32.gmra.mrb[0].mxu0 %v338
  %v444 = vpop.f32.mrb[0].mxu0
  %v445 = vadd.f32 0.0, %v444
  %v446 = vpop.f32.mrb[0].mxu0
  %447 = vmatprep.mubr.f32.mxu0 %v358
  %448 = vmatmul.mubr.f32.gmra.mrb[0].mxu0 %v340
  %v449 = vpop.f32.mrb[0].mxu0
  %v450 = vadd.f32 0.0, %v449
  %v451 = vpop.f32.mrb[0].mxu0
  %452 = vmatprep.mubr.f32.mxu0 %v361
  %453 = vmatmul.mubr.f32.gmra.mrb[0].mxu0 %v342
  %v454 = vpop.f32.mrb[0].mxu0
  %v455 = vadd.f32 0.0, %v454
  %v456 = vpop.f32.mrb[0].mxu0
  %457 = vmatprep.mubr.f32.mxu0 %v364
  %458 = vmatmul.mubr.f32.gmra.mrb[0].mxu0 %v344
  %v459 = vpop.f32.mrb[0].mxu0
  %v460 = vadd.f32 0.0, %v459
  %v461 = vpop.f32.mrb[0].mxu0
  %462 = vmatprep.mubr.f32.mxu0 %v367
  %463 = vmatmul.mubr.f32.gmra.mrb[0].mxu0 %v346
  %v464 = vpop.f32.mrb[0].mxu0
  %v465 = vadd.f32 0.0, %v464
  %v466 = vpop.f32.mrb[0].mxu0
  %467 = vmatprep.mubr.f32.mxu0 %v370
  %468 = vmatmul.mubr.f32.gmra.mrb[0].mxu0 %v348
  %v469 = vpop.f32.mrb[0].mxu0
  %v470 = vadd.f32 0.0, %v469
  %v471 = vpop.f32.mrb[0].mxu0
  %472 = vmatprep.mubr.f32.mxu0 %v373
  %473 = vmatmul.mubr.f32.gmra.mrb[0].mxu0 %v350
  %v474 = vpop.f32.mrb[0].mxu0
  %v475 = vadd.f32 0.0, %v474
  %v476 = vpop.f32.mrb[0].mxu0
  %477 = vmatprep.mubr.f32.mxu0 %v376
  %478 = vmatmul.mubr.f32.gmra.mrb[0].mxu0 %v352
  %v479 = vpop.f32.mrb[0].mxu0
  %v480 = vadd.f32 0.0, %v479
  %v481 = vpop.f32.mrb[0].mxu0
  %482 = vdwg.mxu0
  %v483 = vmax.f32 %v329, %v445
  %v484 = vmax.f32 %v330, %v450
  %v485 = vmax.f32 %v331, %v455
  %v486 = vmax.f32 %v332, %v460
  %v487 = vmax.f32 %v333, %v465
  %v488 = vmax.f32 %v334, %v470
  %v489 = vmax.f32 %v335, %v475
  %v490 = vmax.f32 %v336, %v480
  %s491 = scalar_lea.vmem %s0, 384
  %v492 = vld [vmem:[%s491] sm:$0xff]
  %v493 = vld [vmem:[%s491 + $0x8] sm:$0xff]
  %v494 = vld [vmem:[%s491 + $0x10] sm:$0xff]
  %v495 = vld [vmem:[%s491 + $0x18] sm:$0xff]
  %v496 = vld [vmem:[%s491 + $0x20] sm:$0xff]
  %v497 = vld [vmem:[%s491 + $0x28] sm:$0xff]
  %v498 = vld [vmem:[%s491 + $0x30] sm:$0xff]
  %v499 = vld [vmem:[%s491 + $0x38] sm:$0xff]
  %v500 = vld [vmem:[%s491 + $0x40] sm:$0xff]
  %v501 = vld [vmem:[%s491 + $0x48] sm:$0xff]
  %v502 = vld [vmem:[%s491 + $0x50] sm:$0xff]
  %v503 = vld [vmem:[%s491 + $0x58] sm:$0xff]
  %v504 = vld [vmem:[%s491 + $0x60] sm:$0xff]
  %v505 = vld [vmem:[%s491 + $0x68] sm:$0xff]
  %v506 = vld [vmem:[%s491 + $0x70] sm:$0xff]
  %v507 = vld [vmem:[%s491 + $0x78] sm:$0xff]
  %v509 = vsel %vm49, %v493, 0
  %v512 = vsel %vm49, %v495, 0
  %v515 = vsel %vm49, %v497, 0
  %v518 = vsel %vm49, %v499, 0
  %v521 = vsel %vm49, %v501, 0
  %v524 = vsel %vm49, %v503, 0
  %v527 = vsel %vm49, %v505, 0
  %v530 = vsel %vm49, %v507, 0
  %532 = vmatprep.subr.mxu0 0.0
  %533 = vmatpush1.msra.mxu0 %v14
  %534 = vmatprep.subr.mxu0 0.0
  %535 = vmatpush1.msra.mxu0 %v15
  %536 = vmatprep.subr.mxu0 0.0
  %537 = vmatpush1.msra.mxu0 %v16
  %538 = vmatprep.subr.mxu0 0.0
  %539 = vmatpush1.msra.mxu0 %v17
  %540 = vmatprep.subr.mxu0 0.0
  %541 = vmatpush1.msra.mxu0 %v18
  %542 = vmatprep.subr.mxu0 0.0
  %543 = vmatpush1.msra.mxu0 %v19
  %544 = vmatprep.subr.mxu0 0.0
  %545 = vmatpush1.msra.mxu0 %v20
  %546 = vmatprep.subr.mxu0 0.0
  %547 = vmatpush1.msra.mxu0 %v21
  %548 = vmatprep.subr.mxu0 0.0
  %549 = vmatpush1.msra.mxu0 %v22
  %550 = vmatprep.subr.mxu0 0.0
  %551 = vmatpush1.msra.mxu0 %v23
  %552 = vmatprep.subr.mxu0 0.0
  %553 = vmatpush1.msra.mxu0 %v24
  %554 = vmatprep.subr.mxu0 0.0
  %555 = vmatpush1.msra.mxu0 %v25
  %556 = vmatprep.subr.mxu0 0.0
  %557 = vmatpush1.msra.mxu0 %v26
  %558 = vmatprep.subr.mxu0 0.0
  %559 = vmatpush1.msra.mxu0 %v27
  %560 = vmatprep.subr.mxu0 0.0
  %561 = vmatpush1.msra.mxu0 %v28
  %562 = vmatprep.subr.mxu0 0.0
  %563 = vmatpush1.msra.mxu0 %v29
  %564 = vmatprep.subr.mxu0 0.0
  %565 = vmatpush1.msra.mxu0 %v30
  %566 = vmatprep.subr.mxu0 0.0
  %567 = vmatpush1.msra.mxu0 %v31
  %568 = vmatprep.subr.mxu0 0.0
  %569 = vmatpush1.msra.mxu0 %v76
  %570 = vmatprep.subr.mxu0 0.0
  %571 = vmatpush1.msra.mxu0 0.0
  %572 = vmatprep.subr.mxu0 0.0
  %573 = vmatpush1.msra.mxu0 0.0
  %574 = vmatprep.subr.mxu0 0.0
  %575 = vmatpush1.msra.mxu0 0.0
  %576 = vmatprep.subr.mxu0 0.0
  %577 = vmatpush1.msra.mxu0 0.0
  %578 = vmatprep.subr.mxu0 0.0
  %579 = vmatpush1.msra.mxu0 0.0
  %580 = vmatprep.subr.mxu0 0.0
  %581 = vmatpush1.msra.mxu0 0.0
  %582 = vmatprep.subr.mxu0 0.0
  %583 = vmatpush1.msra.mxu0 0.0
  %584 = vmatprep.subr.mxu0 0.0
  %585 = vmatpush1.msra.mxu0 0.0
  %586 = vmatprep.subr.mxu0 0.0
  %587 = vmatpush1.msra.mxu0 0.0
  %588 = vmatprep.subr.mxu0 0.0
  %589 = vmatpush1.msra.mxu0 0.0
  %590 = vmatprep.subr.mxu0 0.0
  %591 = vmatpush1.msra.mxu0 0.0
  %592 = vmatprep.subr.mxu0 0.0
  %593 = vmatpush1.msra.mxu0 0.0
  %594 = vmatprep.subr.mxu0 0.0
  %595 = vmatpush1.msra.mxu0 0.0
  %596 = vmatprep.mubr.f32.mxu0 %v509
  %597 = vmatmul.mubr.f32.gmra.mrb[0].mxu0 %v492
  %v598 = vpop.f32.mrb[0].mxu0
  %v599 = vadd.f32 0.0, %v598
  %v600 = vpop.f32.mrb[0].mxu0
  %601 = vmatprep.mubr.f32.mxu0 %v512
  %602 = vmatmul.mubr.f32.gmra.mrb[0].mxu0 %v494
  %v603 = vpop.f32.mrb[0].mxu0
  %v604 = vadd.f32 0.0, %v603
  %v605 = vpop.f32.mrb[0].mxu0
  %606 = vmatprep.mubr.f32.mxu0 %v515
  %607 = vmatmul.mubr.f32.gmra.mrb[0].mxu0 %v496
  %v608 = vpop.f32.mrb[0].mxu0
  %v609 = vadd.f32 0.0, %v608
  %v610 = vpop.f32.mrb[0].mxu0
  %611 = vmatprep.mubr.f32.mxu0 %v518
  %612 = vmatmul.mubr.f32.gmra.mrb[0].mxu0 %v498
  %v613 = vpop.f32.mrb[0].mxu0
  %v614 = vadd.f32 0.0, %v613
  %v615 = vpop.f32.mrb[0].mxu0
  %616 = vmatprep.mubr.f32.mxu0 %v521
  %617 = vmatmul.mubr.f32.gmra.mrb[0].mxu0 %v500
  %v618 = vpop.f32.mrb[0].mxu0
  %v619 = vadd.f32 0.0, %v618
  %v620 = vpop.f32.mrb[0].mxu0
  %621 = vmatprep.mubr.f32.mxu0 %v524
  %622 = vmatmul.mubr.f32.gmra.mrb[0].mxu0 %v502
  %v623 = vpop.f32.mrb[0].mxu0
  %v624 = vadd.f32 0.0, %v623
  %v625 = vpop.f32.mrb[0].mxu0
  %626 = vmatprep.mubr.f32.mxu0 %v527
  %627 = vmatmul.mubr.f32.gmra.mrb[0].mxu0 %v504
  %v628 = vpop.f32.mrb[0].mxu0
  %v629 = vadd.f32 0.0, %v628
  %v630 = vpop.f32.mrb[0].mxu0
  %631 = vmatprep.mubr.f32.mxu0 %v530
  %632 = vmatmul.mubr.f32.gmra.mrb[0].mxu0 %v506
  %v633 = vpop.f32.mrb[0].mxu0
  %v634 = vadd.f32 0.0, %v633
  %v635 = vpop.f32.mrb[0].mxu0
  %636 = vdwg.mxu0
  %v637 = vmax.f32 %v483, %v599
  %v638 = vmax.f32 %v484, %v604
  %v639 = vmax.f32 %v485, %v609
  %v640 = vmax.f32 %v486, %v614
  %v641 = vmax.f32 %v487, %v619
  %v642 = vmax.f32 %v488, %v624
  %v643 = vmax.f32 %v489, %v629
  %v644 = vmax.f32 %v490, %v634
  %v645 = vld [vmem:[%s2] sm:$0x1]
  %v647 = vlaneseq
  %v648 = vshrl.u32 %v647, 7
  %v649 = vsub.s32 0, %v648
  %v650 = vrot.slane %v645, %v649
  %v652 = vadd.f32 %v637, %v650
  %v653 = vadd.f32 %v638, %v650
  %v654 = vadd.f32 %v639, %v650
  %v655 = vadd.f32 %v640, %v650
  %v656 = vadd.f32 %v641, %v650
  %v657 = vadd.f32 %v642, %v650
  %v658 = vadd.f32 %v643, %v650
  %v659 = vadd.f32 %v644, %v650
  %v660 = vmax.f32 %v652, 0.0
  %v661 = vmax.f32 %v653, 0.0
  %v662 = vmax.f32 %v654, 0.0
  %v663 = vmax.f32 %v655, 0.0
  %v664 = vmax.f32 %v656, 0.0
  %v665 = vmax.f32 %v657, 0.0
  %v666 = vmax.f32 %v658, 0.0
  %v667 = vmax.f32 %v659, 0.0
  %668 = vst [vmem:[%s3] sm:$0xff] %v660
  %669 = vst [vmem:[%s3 + $0x8] sm:$0xff] %v661
  %670 = vst [vmem:[%s3 + $0x10] sm:$0xff] %v662
  %671 = vst [vmem:[%s3 + $0x18] sm:$0xff] %v663
  %672 = vst [vmem:[%s3 + $0x20] sm:$0xff] %v664
  %673 = vst [vmem:[%s3 + $0x28] sm:$0xff] %v665
  %674 = vst [vmem:[%s3 + $0x30] sm:$0xff] %v666
  %675 = vst [vmem:[%s3 + $0x38] sm:$0xff] %v667
  // Predicated region
  $region14: #{lenet5_forward.4} parent=0 // pred_check
    _
  $region15: #{lenet5_forward.4} parent=0 // pred_check_branch
    %677 = sbr.rel (0) target = $region17
  $region16: #{lenet5_forward.4} parent=0 // pred_region
    _
  $region17: #{lenet5_forward.4} parent=0 // pred_fallthru
    _
  // Predicated region
  $region18: #{lenet5_forward.4} parent=0 // pred_check
    _
  $region19: #{lenet5_forward.4} parent=0 // pred_check_branch
    %679 = sbr.rel (0) target = $region21
  $region20: #{lenet5_forward.4} parent=0 // pred_region
    _
  $region21: #{lenet5_forward.4} parent=0 // pred_fallthru
    _

</llo_original>
